<compile_context>
chip_gen: v6e
topology: v6e:2x2x1
jax: 0.10.0
libtpu: 0.0.40
codegen_flags: <defaults>
</compile_context>

<pallas_src>
import jax
import jax.numpy as jnp
from jax.experimental import pallas as pl
from jax.experimental.pallas import tpu as pltpu

LATENT_DIM = 100
LATENT_PAD = 128            # lane-dense K for the first matmul
H1, H2, H3 = 128, 256, 512
OUT = 28 * 28               # 784
OUT_PAD = 896               # 7 * 128, lane-dense output
BN_EPS = 1e-5


def _fused_batchnorm(x, gamma, beta, inv_b):
    """Training-mode BatchNorm1d as a single scale/shift.

    One reduction sweep: mean and E[x^2] together; biased variance; eps=1e-5.
    x: (B, F) f32, gamma/beta: (1, F) f32.
    """
    mean = jnp.sum(x, axis=0, keepdims=True) * inv_b
    msq = jnp.sum(x * x, axis=0, keepdims=True) * inv_b
    var = msq - mean * mean
    scale = gamma * jax.lax.rsqrt(var + BN_EPS)
    shift = beta - mean * scale
    return x * scale + shift


def generator_kernel(z_ref,
                     w1_ref, b1_ref,
                     w2_ref, b2_ref, g2_ref, be2_ref,
                     w3_ref, b3_ref, g3_ref, be3_ref,
                     w4_ref, b4_ref,
                     out_ref):
    inv_b = 1.0 / z_ref.shape[0]          # trace-time constant

    x = z_ref[...].astype(jnp.bfloat16)   # (B, 128), zero-padded K

    # Linear(100 -> 128) + ReLU   (K padded to 128, pad rows of w1 are zero)
    h = jnp.dot(x, w1_ref[...], preferred_element_type=jnp.float32) + b1_ref[...]
    h = jnp.maximum(h, 0.0)

    # Linear(128 -> 256) + BatchNorm1d(256) + ReLU
    h = jnp.dot(h.astype(jnp.bfloat16), w2_ref[...],
                preferred_element_type=jnp.float32) + b2_ref[...]
    h = _fused_batchnorm(h, g2_ref[...], be2_ref[...], inv_b)
    h = jnp.maximum(h, 0.0)

    # Linear(256 -> 512) + BatchNorm1d(512) + ReLU
    h = jnp.dot(h.astype(jnp.bfloat16), w3_ref[...],
                preferred_element_type=jnp.float32) + b3_ref[...]
    h = _fused_batchnorm(h, g3_ref[...], be3_ref[...], inv_b)
    h = jnp.maximum(h, 0.0)

    # Linear(512 -> 784, padded to 896) + Tanh
    h = jnp.dot(h.astype(jnp.bfloat16), w4_ref[...],
                preferred_element_type=jnp.float32) + b4_ref[...]
    out_ref[...] = jnp.tanh(h).astype(out_ref.dtype)


def _vmem_limit_bytes(batch):
    """Actual kernel footprint x2 headroom, clamped well below 64 MiB (v7x)."""
    weights = 2 * (LATENT_PAD * H1 + H1 * H2 + H2 * H3 + H3 * OUT_PAD)  # bf16
    smalls = 4 * (H1 + 3 * H2 + 3 * H3 + OUT_PAD)                        # f32
    acts = 4 * batch * (LATENT_PAD + H1 + H2 + H3 + 2 * OUT_PAD)         # f32
    return int(min(max(2 * (weights + smalls + acts), 8 << 20), 48 << 20))


def pack_params(params):
    """One-time layout/dtype packing of PyTorch-style f32 params.

    Weights -> bf16, stored as (in_features, out_features); w1 zero-padded to
    K=128; w4/b4 zero-padded to N=896.  Biases and BN affine params stay f32.
    """
    (w1, b1, w2, b2, g2, be2, w3, b3, g3, be3, w4, b4) = params

    w1p = jnp.zeros((LATENT_PAD, H1), jnp.bfloat16)
    w1p = w1p.at[:LATENT_DIM, :].set(w1.astype(jnp.bfloat16))

    w4p = jnp.zeros((H3, OUT_PAD), jnp.bfloat16)
    w4p = w4p.at[:, :OUT].set(w4.astype(jnp.bfloat16))
    b4p = jnp.zeros((1, OUT_PAD), jnp.float32).at[:, :OUT].set(b4)

    return (w1p, b1,
            w2.astype(jnp.bfloat16), b2, g2, be2,
            w3.astype(jnp.bfloat16), b3, g3, be3,
            w4p, b4p)


def generator_forward(z, packed_params):
    """z: (B, LATENT_DIM) float32 -> img: (B, 1, 28, 28) float32."""
    B = z.shape[0]

    # Lane-dense padding of the latent input (zero pad 100 -> 128).
    z_pad = jnp.zeros((B, LATENT_PAD), jnp.float32).at[:, :LATENT_DIM].set(z)

    n_inputs = 1 + len(packed_params)
    vmem_spec = pl.BlockSpec(memory_space=pltpu.MemorySpace.VMEM)

    flat = pl.pallas_call(
        generator_kernel,
        out_shape=jax.ShapeDtypeStruct((B, OUT_PAD), jnp.float32),
        in_specs=[vmem_spec] * n_inputs,
        out_specs=vmem_spec,
        compiler_params=pltpu.CompilerParams(
            vmem_limit_bytes=_vmem_limit_bytes(B)),
    )(z_pad, *packed_params)

    return flat[:, :OUT].reshape(B, 1, 28, 28)


def init_params(key):
    """Deterministic f32 parameter init matching the PyTorch module's shapes."""
    ks = jax.random.split(key, 8)
    scale = 0.05

    def lin(kw, fan_in, fan_out):
        w = jax.random.normal(kw, (fan_in, fan_out), jnp.float32) * scale
        b = jnp.zeros((1, fan_out), jnp.float32)
        return w, b

    w1, b1 = lin(ks[0], LATENT_DIM, H1)
    w2, b2 = lin(ks[1], H1, H2)
    w3, b3 = lin(ks[2], H2, H3)
    w4, b4 = lin(ks[3], H3, OUT)

    # BatchNorm affine params (default init gamma=1, beta=0) — perturbed
    # slightly but deterministically so the affine path is exercised.
    g2 = 1.0 + 0.01 * jax.random.normal(ks[4], (1, H2), jnp.float32)
    be2 = 0.01 * jax.random.normal(ks[5], (1, H2), jnp.float32)
    g3 = 1.0 + 0.01 * jax.random.normal(ks[6], (1, H3), jnp.float32)
    be3 = 0.01 * jax.random.normal(ks[7], (1, H3), jnp.float32)

    return (w1, b1, w2, b2, g2, be2, w3, b3, g3, be3, w4, b4)


def _reference_forward(z, params):
    """Pure-JAX f32 reference mirroring the PyTorch module (training-mode BN)."""
    (w1, b1, w2, b2, g2, be2, w3, b3, g3, be3, w4, b4) = params

    def bn(x, g, b):
        mean = jnp.mean(x, axis=0, keepdims=True)
        var = jnp.mean((x - mean) ** 2, axis=0, keepdims=True)  # biased
        return (x - mean) * jax.lax.rsqrt(var + BN_EPS) * g + b

    h = jnp.maximum(z @ w1 + b1, 0.0)
    h = jnp.maximum(bn(h @ w2 + b2, g2, be2), 0.0)
    h = jnp.maximum(bn(h @ w3 + b3, g3, be3), 0.0)
    h = jnp.tanh(h @ w4 + b4)
    return h.reshape(z.shape[0], 1, 28, 28)


if __name__ == "__main__":
    key = jax.random.PRNGKey(0)
    k_param, k_z = jax.random.split(key)

    params = init_params(k_param)
    packed = pack_params(params)

    batch = 8  # BatchNorm1d(training) needs batch > 1
    z = jax.random.normal(k_z, (batch, LATENT_DIM), jnp.float32)

    img = generator_forward(z, packed)
    img = jax.block_until_ready(img)

    assert img.shape == (batch, 1, 28, 28), img.shape
    assert img.dtype == jnp.float32
    assert bool(jnp.all(jnp.isfinite(img)))
    assert bool(jnp.all(jnp.abs(img) <= 1.0))  # tanh range

    # Loose tolerance vs the f32 reference: bf16 weights/activation casts
    # introduce small drift (accumulation stays f32).
    ref = _reference_forward(z, params)
    max_err = float(jnp.max(jnp.abs(img - ref)))
    assert max_err < 5e-2, f"max abs error vs f32 reference: {max_err}"

    print("KERNEL_OK")
</pallas_src>

<mosaic_0001>
module attributes {stable_mosaic.version = 11 : i64} {
  func.func @generator_kernel(%arg0: memref<8x128xf32, #tpu.memory_space<vmem>>, %arg1: memref<128x128xbf16, #tpu.memory_space<vmem>>, %arg2: memref<1x128xf32, #tpu.memory_space<vmem>>, %arg3: memref<128x256xbf16, #tpu.memory_space<vmem>>, %arg4: memref<1x256xf32, #tpu.memory_space<vmem>>, %arg5: memref<1x256xf32, #tpu.memory_space<vmem>>, %arg6: memref<1x256xf32, #tpu.memory_space<vmem>>, %arg7: memref<256x512xbf16, #tpu.memory_space<vmem>>, %arg8: memref<1x512xf32, #tpu.memory_space<vmem>>, %arg9: memref<1x512xf32, #tpu.memory_space<vmem>>, %arg10: memref<1x512xf32, #tpu.memory_space<vmem>>, %arg11: memref<512x896xbf16, #tpu.memory_space<vmem>>, %arg12: memref<1x896xf32, #tpu.memory_space<vmem>>, %arg13: memref<8x896xf32, #tpu.memory_space<vmem>>) attributes {dimension_semantics = [], scalar_prefetch = 0 : i64, scratch_operands = 0 : i64, tpu.core_type = #tpu.core_type<tc>} {
    %c0 = arith.constant 0 : index
    %c0_0 = arith.constant 0 : index
    %0 = vector.load %arg0[%c0, %c0_0] : memref<8x128xf32, #tpu.memory_space<vmem>>, vector<8x128xf32>
    %1 = arith.truncf %0 : vector<8x128xf32> to vector<8x128xbf16>
    %c0_1 = arith.constant 0 : index
    %c0_2 = arith.constant 0 : index
    %2 = vector.load %arg1[%c0_1, %c0_2] : memref<128x128xbf16, #tpu.memory_space<vmem>>, vector<128x128xbf16>
    %cst = arith.constant dense<0.000000e+00> : vector<8x128xf32>
    %3 = tpu.matmul %1, %2, %cst {dimension_numbers = #tpu.dot_dimension_numbers<[1], [0], [0], [1], [0, 0, 1, 1], [], []>} : vector<8x128xbf16>, vector<128x128xbf16>, vector<8x128xf32> -> vector<8x128xf32>
    %c0_3 = arith.constant 0 : index
    %c0_4 = arith.constant 0 : index
    %4 = vector.load %arg2[%c0_3, %c0_4] : memref<1x128xf32, #tpu.memory_space<vmem>>, vector<1x128xf32>
    %5 = vector.broadcast %4 : vector<1x128xf32> to vector<8x128xf32>
    %6 = arith.addf %3, %5 : vector<8x128xf32>
    %cst_5 = arith.constant 0.000000e+00 : f32
    %7 = vector.broadcast %cst_5 : f32 to vector<8x128xf32>
    %8 = arith.maximumf %6, %7 : vector<8x128xf32>
    %9 = arith.truncf %8 : vector<8x128xf32> to vector<8x128xbf16>
    %c0_6 = arith.constant 0 : index
    %c0_7 = arith.constant 0 : index
    %10 = vector.load %arg3[%c0_6, %c0_7] : memref<128x256xbf16, #tpu.memory_space<vmem>>, vector<128x256xbf16>
    %cst_8 = arith.constant dense<0.000000e+00> : vector<8x256xf32>
    %11 = tpu.matmul %9, %10, %cst_8 {dimension_numbers = #tpu.dot_dimension_numbers<[1], [0], [0], [1], [0, 0, 1, 1], [], []>} : vector<8x128xbf16>, vector<128x256xbf16>, vector<8x256xf32> -> vector<8x256xf32>
    %c0_9 = arith.constant 0 : index
    %c0_10 = arith.constant 0 : index
    %12 = vector.load %arg4[%c0_9, %c0_10] : memref<1x256xf32, #tpu.memory_space<vmem>>, vector<1x256xf32>
    %13 = vector.broadcast %12 : vector<1x256xf32> to vector<8x256xf32>
    %14 = arith.addf %11, %13 : vector<8x256xf32>
    %c0_11 = arith.constant 0 : index
    %c0_12 = arith.constant 0 : index
    %15 = vector.load %arg5[%c0_11, %c0_12] : memref<1x256xf32, #tpu.memory_space<vmem>>, vector<1x256xf32>
    %c0_13 = arith.constant 0 : index
    %c0_14 = arith.constant 0 : index
    %16 = vector.load %arg6[%c0_13, %c0_14] : memref<1x256xf32, #tpu.memory_space<vmem>>, vector<1x256xf32>
    %cst_15 = arith.constant dense<0.000000e+00> : vector<256xf32>
    %17 = vector.multi_reduction <add>, %14, %cst_15 [0] : vector<8x256xf32> to vector<256xf32>
    %18 = vector.shape_cast %17 : vector<256xf32> to vector<1x256xf32>
    %cst_16 = arith.constant 1.250000e-01 : f32
    %19 = vector.broadcast %cst_16 : f32 to vector<1x256xf32>
    %20 = arith.mulf %18, %19 : vector<1x256xf32>
    %21 = arith.mulf %14, %14 : vector<8x256xf32>
    %cst_17 = arith.constant dense<0.000000e+00> : vector<256xf32>
    %22 = vector.multi_reduction <add>, %21, %cst_17 [0] : vector<8x256xf32> to vector<256xf32>
    %23 = vector.shape_cast %22 : vector<256xf32> to vector<1x256xf32>
    %cst_18 = arith.constant 1.250000e-01 : f32
    %24 = vector.broadcast %cst_18 : f32 to vector<1x256xf32>
    %25 = arith.mulf %23, %24 : vector<1x256xf32>
    %26 = arith.mulf %20, %20 : vector<1x256xf32>
    %27 = arith.subf %25, %26 : vector<1x256xf32>
    %cst_19 = arith.constant 9.99999974E-6 : f32
    %28 = vector.broadcast %cst_19 : f32 to vector<1x256xf32>
    %29 = arith.addf %27, %28 : vector<1x256xf32>
    %30 = math.rsqrt %29 : vector<1x256xf32>
    %31 = arith.mulf %15, %30 : vector<1x256xf32>
    %32 = arith.mulf %20, %31 : vector<1x256xf32>
    %33 = arith.subf %16, %32 : vector<1x256xf32>
    %34 = vector.broadcast %31 : vector<1x256xf32> to vector<8x256xf32>
    %35 = arith.mulf %14, %34 : vector<8x256xf32>
    %36 = vector.broadcast %33 : vector<1x256xf32> to vector<8x256xf32>
    %37 = arith.addf %35, %36 : vector<8x256xf32>
    %cst_20 = arith.constant 0.000000e+00 : f32
    %38 = vector.broadcast %cst_20 : f32 to vector<8x256xf32>
    %39 = arith.maximumf %37, %38 : vector<8x256xf32>
    %40 = arith.truncf %39 : vector<8x256xf32> to vector<8x256xbf16>
    %c0_21 = arith.constant 0 : index
    %c0_22 = arith.constant 0 : index
    %41 = vector.load %arg7[%c0_21, %c0_22] : memref<256x512xbf16, #tpu.memory_space<vmem>>, vector<256x512xbf16>
    %cst_23 = arith.constant dense<0.000000e+00> : vector<8x512xf32>
    %42 = tpu.matmul %40, %41, %cst_23 {dimension_numbers = #tpu.dot_dimension_numbers<[1], [0], [0], [1], [0, 0, 1, 1], [], []>} : vector<8x256xbf16>, vector<256x512xbf16>, vector<8x512xf32> -> vector<8x512xf32>
    %c0_24 = arith.constant 0 : index
    %c0_25 = arith.constant 0 : index
    %43 = vector.load %arg8[%c0_24, %c0_25] : memref<1x512xf32, #tpu.memory_space<vmem>>, vector<1x512xf32>
    %44 = vector.broadcast %43 : vector<1x512xf32> to vector<8x512xf32>
    %45 = arith.addf %42, %44 : vector<8x512xf32>
    %c0_26 = arith.constant 0 : index
    %c0_27 = arith.constant 0 : index
    %46 = vector.load %arg9[%c0_26, %c0_27] : memref<1x512xf32, #tpu.memory_space<vmem>>, vector<1x512xf32>
    %c0_28 = arith.constant 0 : index
    %c0_29 = arith.constant 0 : index
    %47 = vector.load %arg10[%c0_28, %c0_29] : memref<1x512xf32, #tpu.memory_space<vmem>>, vector<1x512xf32>
    %cst_30 = arith.constant dense<0.000000e+00> : vector<512xf32>
    %48 = vector.multi_reduction <add>, %45, %cst_30 [0] : vector<8x512xf32> to vector<512xf32>
    %49 = vector.shape_cast %48 : vector<512xf32> to vector<1x512xf32>
    %cst_31 = arith.constant 1.250000e-01 : f32
    %50 = vector.broadcast %cst_31 : f32 to vector<1x512xf32>
    %51 = arith.mulf %49, %50 : vector<1x512xf32>
    %52 = arith.mulf %45, %45 : vector<8x512xf32>
    %cst_32 = arith.constant dense<0.000000e+00> : vector<512xf32>
    %53 = vector.multi_reduction <add>, %52, %cst_32 [0] : vector<8x512xf32> to vector<512xf32>
    %54 = vector.shape_cast %53 : vector<512xf32> to vector<1x512xf32>
    %cst_33 = arith.constant 1.250000e-01 : f32
    %55 = vector.broadcast %cst_33 : f32 to vector<1x512xf32>
    %56 = arith.mulf %54, %55 : vector<1x512xf32>
    %57 = arith.mulf %51, %51 : vector<1x512xf32>
    %58 = arith.subf %56, %57 : vector<1x512xf32>
    %cst_34 = arith.constant 9.99999974E-6 : f32
    %59 = vector.broadcast %cst_34 : f32 to vector<1x512xf32>
    %60 = arith.addf %58, %59 : vector<1x512xf32>
    %61 = math.rsqrt %60 : vector<1x512xf32>
    %62 = arith.mulf %46, %61 : vector<1x512xf32>
    %63 = arith.mulf %51, %62 : vector<1x512xf32>
    %64 = arith.subf %47, %63 : vector<1x512xf32>
    %65 = vector.broadcast %62 : vector<1x512xf32> to vector<8x512xf32>
    %66 = arith.mulf %45, %65 : vector<8x512xf32>
    %67 = vector.broadcast %64 : vector<1x512xf32> to vector<8x512xf32>
    %68 = arith.addf %66, %67 : vector<8x512xf32>
    %cst_35 = arith.constant 0.000000e+00 : f32
    %69 = vector.broadcast %cst_35 : f32 to vector<8x512xf32>
    %70 = arith.maximumf %68, %69 : vector<8x512xf32>
    %71 = arith.truncf %70 : vector<8x512xf32> to vector<8x512xbf16>
    %c0_36 = arith.constant 0 : index
    %c0_37 = arith.constant 0 : index
    %72 = vector.load %arg11[%c0_36, %c0_37] : memref<512x896xbf16, #tpu.memory_space<vmem>>, vector<512x896xbf16>
    %cst_38 = arith.constant dense<0.000000e+00> : vector<8x896xf32>
    %73 = tpu.matmul %71, %72, %cst_38 {dimension_numbers = #tpu.dot_dimension_numbers<[1], [0], [0], [1], [0, 0, 1, 1], [], []>} : vector<8x512xbf16>, vector<512x896xbf16>, vector<8x896xf32> -> vector<8x896xf32>
    %c0_39 = arith.constant 0 : index
    %c0_40 = arith.constant 0 : index
    %74 = vector.load %arg12[%c0_39, %c0_40] : memref<1x896xf32, #tpu.memory_space<vmem>>, vector<1x896xf32>
    %75 = vector.broadcast %74 : vector<1x896xf32> to vector<8x896xf32>
    %76 = arith.addf %73, %75 : vector<8x896xf32>
    %77 = math.tanh %76 : vector<8x896xf32>
    %c0_41 = arith.constant 0 : index
    %c0_42 = arith.constant 0 : index
    %78 = vector.load %arg13[%c0_41, %c0_42] : memref<8x896xf32, #tpu.memory_space<vmem>>, vector<8x896xf32>
    tpu.vector_store %arg13[%c0_41, %c0_42], %77 {strides = array<i32>} : memref<8x896xf32, #tpu.memory_space<vmem>>, vector<8x896xf32>,
    return
  }
}

</mosaic_0001>

<llo_original>
// kernel: tpu_custom_call.1
$region0: #{tpu_custom_call.1}
  #allocation0 [shape = 'u32[]', space=smem, size = 0x4, offset = 0x4, fixed_abs, tag = 'smem constant byte address 0x4 - core index']
  #allocation1 [shape = 'u32[144,128]{1,0:T(1,128)}', space=vmem, size = 0x12000, scoped, tag = 'internal scratch']
  %s0 = inlined_call_operand.hbm [shape: f32[8,128], index: 0, kind: input, shape index: {}]
  %s1 = inlined_call_operand.hbm [shape: bf16[128,128], index: 1, kind: input, shape index: {}]
  %s2 = inlined_call_operand.vmem [shape: f32[1,128], index: 2, kind: input, shape index: {}]
  %s3 = inlined_call_operand.hbm [shape: bf16[128,256], index: 3, kind: input, shape index: {}]
  %s4 = inlined_call_operand.hbm [shape: f32[1,256], index: 4, kind: input, shape index: {}]
  %s5 = inlined_call_operand.hbm [shape: f32[1,256], index: 5, kind: input, shape index: {}]
  %s6 = inlined_call_operand.hbm [shape: f32[1,256], index: 6, kind: input, shape index: {}]
  %s7 = inlined_call_operand.hbm [shape: bf16[256,512], index: 7, kind: input, shape index: {}]
  %s8 = inlined_call_operand.vmem [shape: f32[1,512], index: 8, kind: input, shape index: {}]
  %s9 = inlined_call_operand.vmem [shape: f32[1,512], index: 9, kind: input, shape index: {}]
  %s10 = inlined_call_operand.hbm [shape: f32[1,512], index: 10, kind: input, shape index: {}]
  %s11 = inlined_call_operand.hbm [shape: bf16[512,896], index: 11, kind: input, shape index: {}]
  %s12 = inlined_call_operand.vmem [shape: f32[1,896], index: 12, kind: input, shape index: {}]
  %s13 = inlined_call_operand.hbm [shape: f32[8,896], index: 13, kind: output, shape index: {}]
  %s14 = sld [smem:[#allocation0]]
  $region98: #{tpu_custom_call.1} parent=0
    _
  %s16 = ssub.s32 1, %s14
  %s17 = scalar_select 0, %s16, %s14
  $region1: #{tpu_custom_call.1} parent=0
    #allocation2 [shape = 'u8[4096]{0}', space=vmem, size = 0x1000, scoped, tag = 'input window, operand 0, single buffered']
    #allocation3 [shape = 's32[1]{0}', space=sflag, size = 0x4, scoped, tag = 'scoped memory for tpu_custom_call.1']
    #allocation4 [shape = 's32[1]{0}', space=sflag, size = 0x4, scoped, tag = 'scoped memory for tpu_custom_call.1']
    #allocation5 [shape = 'u8[32768]{0}', space=vmem, size = 0x8000, scoped, tag = 'input window, operand 1, single buffered']
    #allocation6 [shape = 's32[1]{0}', space=sflag, size = 0x4, scoped, tag = 'scoped memory for tpu_custom_call.1']
    #allocation7 [shape = 'u8[65536]{0}', space=vmem, size = 0x10000, scoped, tag = 'input window, operand 3, single buffered']
    #allocation8 [shape = 'u8[1024]{0}', space=vmem, size = 0x400, scoped, tag = 'input window, operand 4, single buffered']
    #allocation9 [shape = 's32[1]{0}', space=sflag, size = 0x4, scoped, tag = 'scoped memory for tpu_custom_call.1']
    #allocation10 [shape = 'u8[1024]{0}', space=vmem, size = 0x400, scoped, tag = 'input window, operand 5, single buffered']
    #allocation11 [shape = 'u8[1024]{0}', space=vmem, size = 0x400, scoped, tag = 'input window, operand 6, single buffered']
    #allocation12 [shape = 's32[1]{0}', space=sflag, size = 0x4, scoped, tag = 'scoped memory for tpu_custom_call.1']
    #allocation13 [shape = 'u8[262144]{0}', space=vmem, size = 0x40000, scoped, tag = 'input window, operand 7, single buffered']
    #allocation14 [shape = 'u8[2048]{0}', space=vmem, size = 0x800, scoped, tag = 'input window, operand 10, single buffered']
    #allocation15 [shape = 's32[1]{0}', space=sflag, size = 0x4, scoped, tag = 'scoped memory for tpu_custom_call.1']
    #allocation16 [shape = 'u8[917504]{0}', space=vmem, size = 0xe0000, scoped, tag = 'input window, operand 11, single buffered']
    #allocation17 [shape = 'u8[28672]{0}', space=vmem, size = 0x7000, scoped, tag = 'output window, operand 0, single buffered']
    %18 = vsyncpa [#allocation3], 0
    %19 = vsyncpa [#allocation6], 0
    %20 = vsyncpa [#allocation9], 0
    %21 = vsyncpa [#allocation12], 0
    %22 = vsyncpa [#allocation15], 0
    %23 = vsyncpa [#allocation4], 0
    // Predicated region
    $region2: #{tpu_custom_call.1} parent=1 // pred_check
      _
    $region3: #{tpu_custom_call.1} parent=1 // pred_check_branch
      %25 = sbr.rel (0) target = $region5
    $region4: #{tpu_custom_call.1} parent=1 // pred_region
      %s27 = ssub.s32 128, 128
      %28 = vsyncadd [#allocation3], %s27
      %s30 = sshll.u32 [#allocation2], 4
      %s31 = int_to_ptr.vmem [resolvable:$true] %s30
      %33 = dma.hbm_to_vmem [thread:$0]  %s0, 128, %s31, [#allocation3]
    $region5: #{tpu_custom_call.1} parent=1 // pred_fallthru
      _
    // Predicated region
    $region6: #{tpu_custom_call.1} parent=1 // pred_check
      _
    $region7: #{tpu_custom_call.1} parent=1 // pred_check_branch
      %35 = sbr.rel (0) target = $region9
    $region8: #{tpu_custom_call.1} parent=1 // pred_region
      %s37 = ssub.s32 1024, 1024
      %38 = vsyncadd [#allocation6], %s37
      %s39 = sshll.u32 [#allocation5], 4
      %s40 = int_to_ptr.vmem [resolvable:$true] %s39
      %45 = dma.hbm_to_vmem [thread:$0]  %s1, 1024, %s40, [#allocation6], 64, 64, 4
    $region9: #{tpu_custom_call.1} parent=1 // pred_fallthru
      _
    // Predicated region
    $region10: #{tpu_custom_call.1} parent=1 // pred_check
      _
    $region11: #{tpu_custom_call.1} parent=1 // pred_check_branch
      %47 = sbr.rel (0) target = $region13
    $region12: #{tpu_custom_call.1} parent=1 // pred_region
      _
    $region13: #{tpu_custom_call.1} parent=1 // pred_fallthru
      _
    // Predicated region
    $region14: #{tpu_custom_call.1} parent=1 // pred_check
      _
    $region15: #{tpu_custom_call.1} parent=1 // pred_check_branch
      %49 = sbr.rel (0) target = $region17
    $region16: #{tpu_custom_call.1} parent=1 // pred_region
      %s51 = ssub.s32 2048, 2048
      %52 = vsyncadd [#allocation6], %s51
      %s53 = sshll.u32 [#allocation7], 4
      %s54 = int_to_ptr.vmem [resolvable:$true] %s53
      %59 = dma.hbm_to_vmem [thread:$0]  %s3, 2048, %s54, [#allocation6], 128, 128, 8
    $region17: #{tpu_custom_call.1} parent=1 // pred_fallthru
      _
    // Predicated region
    $region18: #{tpu_custom_call.1} parent=1 // pred_check
      _
    $region19: #{tpu_custom_call.1} parent=1 // pred_check_branch
      %61 = sbr.rel (0) target = $region21
    $region20: #{tpu_custom_call.1} parent=1 // pred_region
      %s63 = ssub.s32 32, 32
      %64 = vsyncadd [#allocation9], %s63
      %s66 = sshll.u32 [#allocation8], 4
      %s67 = int_to_ptr.vmem [resolvable:$true] %s66
      %69 = dma.hbm_to_vmem [thread:$0]  %s4, 32, %s67, [#allocation9]
    $region21: #{tpu_custom_call.1} parent=1 // pred_fallthru
      _
    // Predicated region
    $region22: #{tpu_custom_call.1} parent=1 // pred_check
      _
    $region23: #{tpu_custom_call.1} parent=1 // pred_check_branch
      %71 = sbr.rel (0) target = $region25
    $region24: #{tpu_custom_call.1} parent=1 // pred_region
      %s73 = ssub.s32 32, 32
      %74 = vsyncadd [#allocation9], %s73
      %s76 = sshll.u32 [#allocation10], 4
      %s77 = int_to_ptr.vmem [resolvable:$true] %s76
      %79 = dma.hbm_to_vmem [thread:$0]  %s5, 32, %s77, [#allocation9]
    $region25: #{tpu_custom_call.1} parent=1 // pred_fallthru
      _
    // Predicated region
    $region26: #{tpu_custom_call.1} parent=1 // pred_check
      _
    $region27: #{tpu_custom_call.1} parent=1 // pred_check_branch
      %81 = sbr.rel (0) target = $region29
    $region28: #{tpu_custom_call.1} parent=1 // pred_region
      %s83 = ssub.s32 32, 32
      %84 = vsyncadd [#allocation12], %s83
      %s86 = sshll.u32 [#allocation11], 4
      %s87 = int_to_ptr.vmem [resolvable:$true] %s86
      %89 = dma.hbm_to_vmem [thread:$0]  %s6, 32, %s87, [#allocation12]
    $region29: #{tpu_custom_call.1} parent=1 // pred_fallthru
      _
    // Predicated region
    $region30: #{tpu_custom_call.1} parent=1 // pred_check
      _
    $region31: #{tpu_custom_call.1} parent=1 // pred_check_branch
      %91 = sbr.rel (0) target = $region33
    $region32: #{tpu_custom_call.1} parent=1 // pred_region
      %s93 = ssub.s32 8192, 8192
      %94 = vsyncadd [#allocation12], %s93
      %s95 = sshll.u32 [#allocation13], 4
      %s96 = int_to_ptr.vmem [resolvable:$true] %s95
      %101 = dma.hbm_to_vmem [thread:$0]  %s7, 8192, %s96, [#allocation12], 256, 256, 16
    $region33: #{tpu_custom_call.1} parent=1 // pred_fallthru
      _
    // Predicated region
    $region34: #{tpu_custom_call.1} parent=1 // pred_check
      _
    $region35: #{tpu_custom_call.1} parent=1 // pred_check_branch
      %103 = sbr.rel (0) target = $region37
    $region36: #{tpu_custom_call.1} parent=1 // pred_region
      _
    $region37: #{tpu_custom_call.1} parent=1 // pred_fallthru
      _
    // Predicated region
    $region38: #{tpu_custom_call.1} parent=1 // pred_check
      _
    $region39: #{tpu_custom_call.1} parent=1 // pred_check_branch
      %105 = sbr.rel (0) target = $region41
    $region40: #{tpu_custom_call.1} parent=1 // pred_region
      _
    $region41: #{tpu_custom_call.1} parent=1 // pred_fallthru
      _
    // Predicated region
    $region42: #{tpu_custom_call.1} parent=1 // pred_check
      _
    $region43: #{tpu_custom_call.1} parent=1 // pred_check_branch
      %107 = sbr.rel (0) target = $region45
    $region44: #{tpu_custom_call.1} parent=1 // pred_region
      %s109 = ssub.s32 64, 64
      %110 = vsyncadd [#allocation15], %s109
      %s112 = sshll.u32 [#allocation14], 4
      %s113 = int_to_ptr.vmem [resolvable:$true] %s112
      %115 = dma.hbm_to_vmem [thread:$0]  %s10, 64, %s113, [#allocation15]
    $region45: #{tpu_custom_call.1} parent=1 // pred_fallthru
      _
    // Predicated region
    $region46: #{tpu_custom_call.1} parent=1 // pred_check
      _
    $region47: #{tpu_custom_call.1} parent=1 // pred_check_branch
      %117 = sbr.rel (0) target = $region49
    $region48: #{tpu_custom_call.1} parent=1 // pred_region
      %s119 = ssub.s32 28672, 28672
      %120 = vsyncadd [#allocation15], %s119
      %s121 = sshll.u32 [#allocation16], 4
      %s122 = int_to_ptr.vmem [resolvable:$true] %s121
      %127 = dma.hbm_to_vmem [thread:$0]  %s11, 28672, %s122, [#allocation15], 448, 448, 28
    $region49: #{tpu_custom_call.1} parent=1 // pred_fallthru
      _
    // Predicated region
    $region50: #{tpu_custom_call.1} parent=1 // pred_check
      _
    $region51: #{tpu_custom_call.1} parent=1 // pred_check_branch
      %129 = sbr.rel (0) target = $region53
    $region52: #{tpu_custom_call.1} parent=1 // pred_region
      _
    $region53: #{tpu_custom_call.1} parent=1 // pred_fallthru
      _
    // Predicated region
    $region54: #{tpu_custom_call.1} parent=1 // pred_check
      _
    $region55: #{tpu_custom_call.1} parent=1 // pred_check_branch
      %131 = sbr.rel (0) target = $region57
    $region56: #{tpu_custom_call.1} parent=1 // pred_region
      %132 = dma.done [#allocation3], 128
    $region57: #{tpu_custom_call.1} parent=1 // pred_fallthru
      _
    // Predicated region
    $region58: #{tpu_custom_call.1} parent=1 // pred_check
      _
    $region59: #{tpu_custom_call.1} parent=1 // pred_check_branch
      %134 = sbr.rel (0) target = $region61
    $region60: #{tpu_custom_call.1} parent=1 // pred_region
      %135 = dma.done [#allocation6], 1024
    $region61: #{tpu_custom_call.1} parent=1 // pred_fallthru
      _
    // Predicated region
    $region62: #{tpu_custom_call.1} parent=1 // pred_check
      _
    $region63: #{tpu_custom_call.1} parent=1 // pred_check_branch
      %137 = sbr.rel (0) target = $region65
    $region64: #{tpu_custom_call.1} parent=1 // pred_region
      %138 = dma.done [#allocation6], 2048
    $region65: #{tpu_custom_call.1} parent=1 // pred_fallthru
      _
    // Predicated region
    $region66: #{tpu_custom_call.1} parent=1 // pred_check
      _
    $region67: #{tpu_custom_call.1} parent=1 // pred_check_branch
      %140 = sbr.rel (0) target = $region69
    $region68: #{tpu_custom_call.1} parent=1 // pred_region
      %141 = dma.done [#allocation9], 32
    $region69: #{tpu_custom_call.1} parent=1 // pred_fallthru
      _
    // Predicated region
    $region70: #{tpu_custom_call.1} parent=1 // pred_check
      _
    $region71: #{tpu_custom_call.1} parent=1 // pred_check_branch
      %143 = sbr.rel (0) target = $region73
    $region72: #{tpu_custom_call.1} parent=1 // pred_region
      %144 = dma.done [#allocation9], 32
    $region73: #{tpu_custom_call.1} parent=1 // pred_fallthru
      _
    // Predicated region
    $region74: #{tpu_custom_call.1} parent=1 // pred_check
      _
    $region75: #{tpu_custom_call.1} parent=1 // pred_check_branch
      %146 = sbr.rel (0) target = $region77
    $region76: #{tpu_custom_call.1} parent=1 // pred_region
      %147 = dma.done [#allocation12], 32
    $region77: #{tpu_custom_call.1} parent=1 // pred_fallthru
      _
    // Predicated region
    $region78: #{tpu_custom_call.1} parent=1 // pred_check
      _
    $region79: #{tpu_custom_call.1} parent=1 // pred_check_branch
      %149 = sbr.rel (0) target = $region81
    $region80: #{tpu_custom_call.1} parent=1 // pred_region
      %150 = dma.done [#allocation12], 8192
    $region81: #{tpu_custom_call.1} parent=1 // pred_fallthru
      _
    // Predicated region
    $region82: #{tpu_custom_call.1} parent=1 // pred_check
      _
    $region83: #{tpu_custom_call.1} parent=1 // pred_check_branch
      %152 = sbr.rel (0) target = $region85
    $region84: #{tpu_custom_call.1} parent=1 // pred_region
      %153 = dma.done [#allocation15], 64
    $region85: #{tpu_custom_call.1} parent=1 // pred_fallthru
      _
    // Predicated region
    $region86: #{tpu_custom_call.1} parent=1 // pred_check
      _
    $region87: #{tpu_custom_call.1} parent=1 // pred_check_branch
      %155 = sbr.rel (0) target = $region89
    $region88: #{tpu_custom_call.1} parent=1 // pred_region
      %156 = dma.done [#allocation15], 28672
    $region89: #{tpu_custom_call.1} parent=1 // pred_fallthru
      _
    %v158 = vld [vmem:[#allocation2] sm:$0xff]
    %v159 = vpack.c.bf16 %v158, %v158
    %v160 = vld [vmem:[#allocation5] sm:$0xf]
    %v161 = vld [vmem:[#allocation5 + $0x4] sm:$0xf]
    %v162 = vld [vmem:[#allocation5 + $0x8] sm:$0xf]
    %v163 = vld [vmem:[#allocation5 + $0xc] sm:$0xf]
    %v164 = vld [vmem:[#allocation5 + $0x10] sm:$0xf]
    %v165 = vld [vmem:[#allocation5 + $0x14] sm:$0xf]
    %v166 = vld [vmem:[#allocation5 + $0x18] sm:$0xf]
    %v167 = vld [vmem:[#allocation5 + $0x1c] sm:$0xf]
    %v168 = vld [vmem:[#allocation5 + $0x20] sm:$0xf]
    %v169 = vld [vmem:[#allocation5 + $0x24] sm:$0xf]
    %v170 = vld [vmem:[#allocation5 + $0x28] sm:$0xf]
    %v171 = vld [vmem:[#allocation5 + $0x2c] sm:$0xf]
    %v172 = vld [vmem:[#allocation5 + $0x30] sm:$0xf]
    %v173 = vld [vmem:[#allocation5 + $0x34] sm:$0xf]
    %v174 = vld [vmem:[#allocation5 + $0x38] sm:$0xf]
    %v175 = vld [vmem:[#allocation5 + $0x3c] sm:$0xf]
    %v176 = vld [vmem:[%s2] sm:$0x1]
    %v178 = vlaneseq
    %v179 = vshrl.u32 %v178, 7
    %v180 = vsub.s32 0, %v179
    %v181 = vrot.slane %v176, %v180
    %v199 = vunpack.c.l.b16 %v160
    %v200 = vunpack.c.l.b16 %v161
    %v201 = vunpack.c.l.b16 %v162
    %v202 = vunpack.c.l.b16 %v163
    %v203 = vunpack.c.l.b16 %v164
    %v204 = vunpack.c.l.b16 %v165
    %v205 = vunpack.c.l.b16 %v166
    %v206 = vunpack.c.l.b16 %v167
    %v207 = vunpack.c.l.b16 %v168
    %v208 = vunpack.c.l.b16 %v169
    %v209 = vunpack.c.l.b16 %v170
    %v210 = vunpack.c.l.b16 %v171
    %v211 = vunpack.c.l.b16 %v172
    %v212 = vunpack.c.l.b16 %v173
    %v213 = vunpack.c.l.b16 %v174
    %v214 = vunpack.c.l.b16 %v175
    %v215 = vpack.c.b16 %v200, %v199
    %v216 = vpack.c.b16 %v202, %v201
    %v217 = vpack.c.b16 %v204, %v203
    %v218 = vpack.c.b16 %v206, %v205
    %v219 = vpack.c.b16 %v208, %v207
    %v220 = vpack.c.b16 %v210, %v209
    %v221 = vpack.c.b16 %v212, %v211
    %v222 = vpack.c.b16 %v214, %v213
    %231 = vmatprep.subr.bf16.mxu0 0
    %232 = vmatpush1.bf16.msra.mxu0 %v222
    %233 = vmatprep.subr.bf16.mxu0 0
    %234 = vmatpush1.bf16.msra.mxu0 %v221
    %235 = vmatprep.subr.bf16.mxu0 0
    %236 = vmatpush1.bf16.msra.mxu0 %v220
    %237 = vmatprep.subr.bf16.mxu0 0
    %238 = vmatpush1.bf16.msra.mxu0 %v219
    %239 = vmatprep.subr.bf16.mxu0 0
    %240 = vmatpush1.bf16.msra.mxu0 %v218
    %241 = vmatprep.subr.bf16.mxu0 0
    %242 = vmatpush1.bf16.msra.mxu0 %v217
    %243 = vmatprep.subr.bf16.mxu0 0
    %244 = vmatpush1.bf16.msra.mxu0 %v216
    %245 = vmatprep.subr.bf16.mxu0 0
    %246 = vmatpush1.bf16.msra.mxu0 %v215
    %247 = vmatprep.subr.bf16.mxu0 0
    %248 = vmatpush2.bf16.msra.mxu0 0
    %249 = vmatprep.subr.bf16.mxu0 0
    %250 = vmatpush2.bf16.msra.mxu0 0
    %251 = vmatprep.subr.bf16.mxu0 0
    %252 = vmatpush2.bf16.msra.mxu0 0
    %253 = vmatprep.subr.bf16.mxu0 0
    %254 = vmatpush2.bf16.msra.mxu0 0
    %255 = vmatprep.subr.bf16.mxu0 0
    %256 = vmatpush2.bf16.msra.mxu0 0
    %257 = vmatprep.subr.bf16.mxu0 0
    %258 = vmatpush2.bf16.msra.mxu0 0
    %259 = vmatprep.subr.bf16.mxu0 0
    %260 = vmatpush2.bf16.msra.mxu0 0
    %261 = vmatprep.subr.bf16.mxu0 0
    %262 = vmatpush2.bf16.msra.mxu0 0
    %263 = vmatprep.mubr.bf16.mxu0 0
    %264 = vmatmul.mubr.bf16.gmra.mxu0 %v159
    %v265 = vpop.f32.mrf.mxu0
    %v266 = vadd.f32 %v181, %v265
    %v267 = vpop.f32.mrf.mxu0
    %v268 = vpop.f32.mrf.mxu0
    %v269 = vpop.f32.mrf.mxu0
    %270 = vdwg.mxu0
    %v271 = vmax.f32 %v266, 0.0
    %v272 = vpack.c.bf16 %v271, %v271
    %v273 = vld [vmem:[#allocation7] sm:$0xff]
    %v274 = vld [vmem:[#allocation7 + $0x8] sm:$0xff]
    %v275 = vld [vmem:[#allocation7 + $0x10] sm:$0xff]
    %v276 = vld [vmem:[#allocation7 + $0x18] sm:$0xff]
    %v277 = vld [vmem:[#allocation7 + $0x20] sm:$0xff]
    %v278 = vld [vmem:[#allocation7 + $0x28] sm:$0xff]
    %v279 = vld [vmem:[#allocation7 + $0x30] sm:$0xff]
    %v280 = vld [vmem:[#allocation7 + $0x38] sm:$0xff]
    %v281 = vld [vmem:[#allocation7 + $0x40] sm:$0xff]
    %v282 = vld [vmem:[#allocation7 + $0x48] sm:$0xff]
    %v283 = vld [vmem:[#allocation7 + $0x50] sm:$0xff]
    %v284 = vld [vmem:[#allocation7 + $0x58] sm:$0xff]
    %v285 = vld [vmem:[#allocation7 + $0x60] sm:$0xff]
    %v286 = vld [vmem:[#allocation7 + $0x68] sm:$0xff]
    %v287 = vld [vmem:[#allocation7 + $0x70] sm:$0xff]
    %v288 = vld [vmem:[#allocation7 + $0x78] sm:$0xff]
    %v289 = vld [vmem:[#allocation8] sm:$0x3]
    %v291 = vlaneseq
    %v292 = vshrl.u32 %v291, 7
    %v293 = vsub.s32 0, %v292
    %v294 = vrot.slane %v289, %v293
    %v295 = vlaneseq
    %v296 = vshrl.u32 %v295, 7
    %v297 = vsub.s32 1, %v296
    %v298 = vrot.slane %v289, %v297
    %v317 = vunpack.c.l.b16 %v273
    %v318 = vunpack.c.h.b16 %v273
    %v319 = vunpack.c.l.b16 %v274
    %v320 = vunpack.c.h.b16 %v274
    %v321 = vunpack.c.l.b16 %v275
    %v322 = vunpack.c.h.b16 %v275
    %v323 = vunpack.c.l.b16 %v276
    %v324 = vunpack.c.h.b16 %v276
    %v325 = vunpack.c.l.b16 %v277
    %v326 = vunpack.c.h.b16 %v277
    %v327 = vunpack.c.l.b16 %v278
    %v328 = vunpack.c.h.b16 %v278
    %v329 = vunpack.c.l.b16 %v279
    %v330 = vunpack.c.h.b16 %v279
    %v331 = vunpack.c.l.b16 %v280
    %v332 = vunpack.c.h.b16 %v280
    %v333 = vunpack.c.l.b16 %v281
    %v334 = vunpack.c.h.b16 %v281
    %v335 = vunpack.c.l.b16 %v282
    %v336 = vunpack.c.h.b16 %v282
    %v337 = vunpack.c.l.b16 %v283
    %v338 = vunpack.c.h.b16 %v283
    %v339 = vunpack.c.l.b16 %v284
    %v340 = vunpack.c.h.b16 %v284
    %v341 = vunpack.c.l.b16 %v285
    %v342 = vunpack.c.h.b16 %v285
    %v343 = vunpack.c.l.b16 %v286
    %v344 = vunpack.c.h.b16 %v286
    %v345 = vunpack.c.l.b16 %v287
    %v346 = vunpack.c.h.b16 %v287
    %v347 = vunpack.c.l.b16 %v288
    %v348 = vunpack.c.h.b16 %v288
    %v349 = vpack.c.b16 %v319, %v317
    %v350 = vpack.c.b16 %v320, %v318
    %v351 = vpack.c.b16 %v323, %v321
    %v352 = vpack.c.b16 %v324, %v322
    %v353 = vpack.c.b16 %v327, %v325
    %v354 = vpack.c.b16 %v328, %v326
    %v355 = vpack.c.b16 %v331, %v329
    %v356 = vpack.c.b16 %v332, %v330
    %v357 = vpack.c.b16 %v335, %v333
    %v358 = vpack.c.b16 %v336, %v334
    %v359 = vpack.c.b16 %v339, %v337
    %v360 = vpack.c.b16 %v340, %v338
    %v361 = vpack.c.b16 %v343, %v341
    %v362 = vpack.c.b16 %v344, %v342
    %v363 = vpack.c.b16 %v347, %v345
    %v364 = vpack.c.b16 %v348, %v346
    %381 = vmatprep.subr.bf16.mxu0 %v364
    %382 = vmatpush1.bf16.msra.mxu0 %v363
    %383 = vmatprep.subr.bf16.mxu0 %v362
    %384 = vmatpush1.bf16.msra.mxu0 %v361
    %385 = vmatprep.subr.bf16.mxu0 %v360
    %386 = vmatpush1.bf16.msra.mxu0 %v359
    %387 = vmatprep.subr.bf16.mxu0 %v358
    %388 = vmatpush1.bf16.msra.mxu0 %v357
    %389 = vmatprep.subr.bf16.mxu0 %v356
    %390 = vmatpush1.bf16.msra.mxu0 %v355
    %391 = vmatprep.subr.bf16.mxu0 %v354
    %392 = vmatpush1.bf16.msra.mxu0 %v353
    %393 = vmatprep.subr.bf16.mxu0 %v352
    %394 = vmatpush1.bf16.msra.mxu0 %v351
    %395 = vmatprep.subr.bf16.mxu0 %v350
    %396 = vmatpush1.bf16.msra.mxu0 %v349
    %397 = vmatprep.subr.bf16.mxu0 0
    %398 = vmatpush2.bf16.msra.mxu0 0
    %399 = vmatprep.subr.bf16.mxu0 0
    %400 = vmatpush2.bf16.msra.mxu0 0
    %401 = vmatprep.subr.bf16.mxu0 0
    %402 = vmatpush2.bf16.msra.mxu0 0
    %403 = vmatprep.subr.bf16.mxu0 0
    %404 = vmatpush2.bf16.msra.mxu0 0
    %405 = vmatprep.subr.bf16.mxu0 0
    %406 = vmatpush2.bf16.msra.mxu0 0
    %407 = vmatprep.subr.bf16.mxu0 0
    %408 = vmatpush2.bf16.msra.mxu0 0
    %409 = vmatprep.subr.bf16.mxu0 0
    %410 = vmatpush2.bf16.msra.mxu0 0
    %411 = vmatprep.subr.bf16.mxu0 0
    %412 = vmatpush2.bf16.msra.mxu0 0
    %413 = vmatprep.mubr.bf16.mxu0 0
    %414 = vmatmul.mubr.bf16.gmra.mxu0 %v272
    %v415 = vpop.f32.mrf.mxu0
    %v416 = vadd.f32 %v294, %v415
    %v417 = vpop.f32.mrf.mxu0
    %v418 = vadd.f32 %v298, %v417
    %v419 = vpop.f32.mrf.mxu0
    %v420 = vpop.f32.mrf.mxu0
    %421 = vdwg.mxu0
    %v422 = vld [vmem:[#allocation10] sm:$0x3]
    %v423 = vld [vmem:[#allocation11] sm:$0x3]
    %v424 = vrot.slane %v416, 4
    %v425 = vadd.f32 %v416, %v424
    %v426 = vrot.slane %v425, 2
    %v427 = vadd.f32 %v425, %v426
    %v428 = vrot.slane %v427, 1
    %v429 = vadd.f32 %v427, %v428
    %v430 = vrot.slane %v418, 4
    %v431 = vadd.f32 %v418, %v430
    %v432 = vrot.slane %v431, 2
    %v433 = vadd.f32 %v431, %v432
    %v434 = vrot.slane %v433, 1
    %v435 = vadd.f32 %v433, %v434
    %v436 = vmul.f32 %v429, 0.125
    %v437 = vmul.f32 %v435, 0.125
    %v438 = vmul.f32 %v416, %v416
    %v439 = vmul.f32 %v418, %v418
    %v440 = vrot.slane %v438, 4
    %v441 = vadd.f32 %v438, %v440
    %v442 = vrot.slane %v441, 2
    %v443 = vadd.f32 %v441, %v442
    %v444 = vrot.slane %v443, 1
    %v445 = vadd.f32 %v443, %v444
    %v446 = vrot.slane %v439, 4
    %v447 = vadd.f32 %v439, %v446
    %v448 = vrot.slane %v447, 2
    %v449 = vadd.f32 %v447, %v448
    %v450 = vrot.slane %v449, 1
    %v451 = vadd.f32 %v449, %v450
    %v452 = vmul.f32 %v445, 0.125
    %v453 = vmul.f32 %v451, 0.125
    %v454 = vmul.f32 %v436, %v436
    %v455 = vmul.f32 %v437, %v437
    %v456 = vsub.f32 %v452, %v454
    %v457 = vsub.f32 %v453, %v455
    %v458 = vadd.f32 %v456, 1e-05
    %v459 = vadd.f32 %v457, 1e-05
    %v460 = vrsqrt.pop %v458
    %v461 = vrsqrt.pop %v459
    %v464 = vcombine.low %v460, %v461
    %v466 = vunpack.c.l.s4 1966171168
    %v467 = vunpack.c.0.s8 %v466
    %v468 = vlaneseq
    %v469 = vshrl.u32 %v468, 7
    %v470 = vsub.s32 %v467, %v469
    %v471 = vrot.slane %v464, %v470
    %v473 = vunpack.c.l.s4 1966171168
    %v474 = vunpack.c.0.s8 %v473
    %v475 = vlaneseq
    %v476 = vshrl.u32 %v475, 7
    %v477 = vsub.s32 %v474, %v476
    %v478 = vrot.slane %v471, %v477
    %v480 = vmul.f32 %v422, %v478
    %v482 = vlaneseq
    %v483 = vshrl.u32 %v482, 7
    %v484 = vsub.s32 0, %v483
    %v485 = vrot.slane %v480, %v484
    %v486 = vlaneseq
    %v487 = vshrl.u32 %v486, 7
    %v488 = vsub.s32 1, %v487
    %v489 = vrot.slane %v480, %v488
    %v492 = vmul.f32 %v436, %v485
    %v493 = vmul.f32 %v437, %v489
    %v496 = vcombine.low %v492, %v493
    %v498 = vunpack.c.l.s4 1966171168
    %v499 = vunpack.c.0.s8 %v498
    %v500 = vlaneseq
    %v501 = vshrl.u32 %v500, 7
    %v502 = vsub.s32 %v499, %v501
    %v503 = vrot.slane %v496, %v502
    %v505 = vunpack.c.l.s4 1966171168
    %v506 = vunpack.c.0.s8 %v505
    %v507 = vlaneseq
    %v508 = vshrl.u32 %v507, 7
    %v509 = vsub.s32 %v506, %v508
    %v510 = vrot.slane %v503, %v509
    %v512 = vsub.f32 %v423, %v510
    %v513 = vmul.f32 %v416, %v485
    %v514 = vmul.f32 %v418, %v489
    %v516 = vlaneseq
    %v517 = vshrl.u32 %v516, 7
    %v518 = vsub.s32 0, %v517
    %v519 = vrot.slane %v512, %v518
    %v520 = vlaneseq
    %v521 = vshrl.u32 %v520, 7
    %v522 = vsub.s32 1, %v521
    %v523 = vrot.slane %v512, %v522
    %v526 = vadd.f32 %v513, %v519
    %v527 = vadd.f32 %v514, %v523
    %v528 = vmax.f32 %v526, 0.0
    %v529 = vmax.f32 %v527, 0.0
    %v530 = vpack.c.bf16 %v528, %v528
    %v531 = vpack.c.bf16 %v529, %v529
    %v532 = vld [vmem:[#allocation13] sm:$0xff]
    %v533 = vld [vmem:[#allocation13 + $0x8] sm:$0xff]
    %v534 = vld [vmem:[#allocation13 + $0x10] sm:$0xff]
    %v535 = vld [vmem:[#allocation13 + $0x18] sm:$0xff]
    %v536 = vld [vmem:[#allocation13 + $0x20] sm:$0xff]
    %v537 = vld [vmem:[#allocation13 + $0x28] sm:$0xff]
    %v538 = vld [vmem:[#allocation13 + $0x30] sm:$0xff]
    %v539 = vld [vmem:[#allocation13 + $0x38] sm:$0xff]
    %v540 = vld [vmem:[#allocation13 + $0x40] sm:$0xff]
    %v541 = vld [vmem:[#allocation13 + $0x48] sm:$0xff]
    %v542 = vld [vmem:[#allocation13 + $0x50] sm:$0xff]
    %v543 = vld [vmem:[#allocation13 + $0x58] sm:$0xff]
    %v544 = vld [vmem:[#allocation13 + $0x60] sm:$0xff]
    %v545 = vld [vmem:[#allocation13 + $0x68] sm:$0xff]
    %v546 = vld [vmem:[#allocation13 + $0x70] sm:$0xff]
    %v547 = vld [vmem:[#allocation13 + $0x78] sm:$0xff]
    %v548 = vld [vmem:[#allocation13 + $0x80] sm:$0xff]
    %v549 = vld [vmem:[#allocation13 + $0x88] sm:$0xff]
    %v550 = vld [vmem:[#allocation13 + $0x90] sm:$0xff]
    %v551 = vld [vmem:[#allocation13 + $0x98] sm:$0xff]
    %v552 = vld [vmem:[#allocation13 + $0xa0] sm:$0xff]
    %v553 = vld [vmem:[#allocation13 + $0xa8] sm:$0xff]
    %v554 = vld [vmem:[#allocation13 + $0xb0] sm:$0xff]
    %v555 = vld [vmem:[#allocation13 + $0xb8] sm:$0xff]
    %v556 = vld [vmem:[#allocation13 + $0xc0] sm:$0xff]
    %v557 = vld [vmem:[#allocation13 + $0xc8] sm:$0xff]
    %v558 = vld [vmem:[#allocation13 + $0xd0] sm:$0xff]
    %v559 = vld [vmem:[#allocation13 + $0xd8] sm:$0xff]
    %v560 = vld [vmem:[#allocation13 + $0xe0] sm:$0xff]
    %v561 = vld [vmem:[#allocation13 + $0xe8] sm:$0xff]
    %v562 = vld [vmem:[#allocation13 + $0xf0] sm:$0xff]
    %v563 = vld [vmem:[#allocation13 + $0xf8] sm:$0xff]
    %v564 = vld [vmem:[#allocation13 + $0x100] sm:$0xff]
    %v565 = vld [vmem:[#allocation13 + $0x108] sm:$0xff]
    %v566 = vld [vmem:[#allocation13 + $0x110] sm:$0xff]
    %v567 = vld [vmem:[#allocation13 + $0x118] sm:$0xff]
    %v568 = vld [vmem:[#allocation13 + $0x120] sm:$0xff]
    %v569 = vld [vmem:[#allocation13 + $0x128] sm:$0xff]
    %v570 = vld [vmem:[#allocation13 + $0x130] sm:$0xff]
    %v571 = vld [vmem:[#allocation13 + $0x138] sm:$0xff]
    %v572 = vld [vmem:[#allocation13 + $0x140] sm:$0xff]
    %v573 = vld [vmem:[#allocation13 + $0x148] sm:$0xff]
    %v574 = vld [vmem:[#allocation13 + $0x150] sm:$0xff]
    %v575 = vld [vmem:[#allocation13 + $0x158] sm:$0xff]
    %v576 = vld [vmem:[#allocation13 + $0x160] sm:$0xff]
    %v577 = vld [vmem:[#allocation13 + $0x168] sm:$0xff]
    %v578 = vld [vmem:[#allocation13 + $0x170] sm:$0xff]
    %v579 = vld [vmem:[#allocation13 + $0x178] sm:$0xff]
    %v580 = vld [vmem:[#allocation13 + $0x180] sm:$0xff]
    %v581 = vld [vmem:[#allocation13 + $0x188] sm:$0xff]
    %v582 = vld [vmem:[#allocation13 + $0x190] sm:$0xff]
    %v583 = vld [vmem:[#allocation13 + $0x198] sm:$0xff]
    %v584 = vld [vmem:[#allocation13 + $0x1a0] sm:$0xff]
    %v585 = vld [vmem:[#allocation13 + $0x1a8] sm:$0xff]
    %v586 = vld [vmem:[#allocation13 + $0x1b0] sm:$0xff]
    %v587 = vld [vmem:[#allocation13 + $0x1b8] sm:$0xff]
    %v588 = vld [vmem:[#allocation13 + $0x1c0] sm:$0xff]
    %v589 = vld [vmem:[#allocation13 + $0x1c8] sm:$0xff]
    %v590 = vld [vmem:[#allocation13 + $0x1d0] sm:$0xff]
    %v591 = vld [vmem:[#allocation13 + $0x1d8] sm:$0xff]
    %v592 = vld [vmem:[#allocation13 + $0x1e0] sm:$0xff]
    %v593 = vld [vmem:[#allocation13 + $0x1e8] sm:$0xff]
    %v594 = vld [vmem:[#allocation13 + $0x1f0] sm:$0xff]
    %v595 = vld [vmem:[#allocation13 + $0x1f8] sm:$0xff]
    %v596 = vld [vmem:[%s8] sm:$0xf]
    %v598 = vlaneseq
    %v599 = vshrl.u32 %v598, 7
    %v600 = vsub.s32 0, %v599
    %v601 = vrot.slane %v596, %v600
    %v602 = vlaneseq
    %v603 = vshrl.u32 %v602, 7
    %v604 = vsub.s32 1, %v603
    %v605 = vrot.slane %v596, %v604
    %v606 = vlaneseq
    %v607 = vshrl.u32 %v606, 7
    %v608 = vsub.s32 2, %v607
    %v609 = vrot.slane %v596, %v608
    %v610 = vlaneseq
    %v611 = vshrl.u32 %v610, 7
    %v612 = vsub.s32 3, %v611
    %v613 = vrot.slane %v596, %v612
    %v682 = vunpack.c.l.b16 %v532
    %v683 = vunpack.c.h.b16 %v532
    %v684 = vunpack.c.l.b16 %v533
    %v685 = vunpack.c.h.b16 %v533
    %v686 = vunpack.c.l.b16 %v534
    %v687 = vunpack.c.h.b16 %v534
    %v688 = vunpack.c.l.b16 %v535
    %v689 = vunpack.c.h.b16 %v535
    %v690 = vunpack.c.l.b16 %v536
    %v691 = vunpack.c.h.b16 %v536
    %v692 = vunpack.c.l.b16 %v537
    %v693 = vunpack.c.h.b16 %v537
    %v694 = vunpack.c.l.b16 %v538
    %v695 = vunpack.c.h.b16 %v538
    %v696 = vunpack.c.l.b16 %v539
    %v697 = vunpack.c.h.b16 %v539
    %v698 = vunpack.c.l.b16 %v540
    %v699 = vunpack.c.h.b16 %v540
    %v700 = vunpack.c.l.b16 %v541
    %v701 = vunpack.c.h.b16 %v541
    %v702 = vunpack.c.l.b16 %v542
    %v703 = vunpack.c.h.b16 %v542
    %v704 = vunpack.c.l.b16 %v543
    %v705 = vunpack.c.h.b16 %v543
    %v706 = vunpack.c.l.b16 %v544
    %v707 = vunpack.c.h.b16 %v544
    %v708 = vunpack.c.l.b16 %v545
    %v709 = vunpack.c.h.b16 %v545
    %v710 = vunpack.c.l.b16 %v546
    %v711 = vunpack.c.h.b16 %v546
    %v712 = vunpack.c.l.b16 %v547
    %v713 = vunpack.c.h.b16 %v547
    %v714 = vunpack.c.l.b16 %v548
    %v715 = vunpack.c.h.b16 %v548
    %v716 = vunpack.c.l.b16 %v549
    %v717 = vunpack.c.h.b16 %v549
    %v718 = vunpack.c.l.b16 %v550
    %v719 = vunpack.c.h.b16 %v550
    %v720 = vunpack.c.l.b16 %v551
    %v721 = vunpack.c.h.b16 %v551
    %v722 = vunpack.c.l.b16 %v552
    %v723 = vunpack.c.h.b16 %v552
    %v724 = vunpack.c.l.b16 %v553
    %v725 = vunpack.c.h.b16 %v553
    %v726 = vunpack.c.l.b16 %v554
    %v727 = vunpack.c.h.b16 %v554
    %v728 = vunpack.c.l.b16 %v555
    %v729 = vunpack.c.h.b16 %v555
    %v730 = vunpack.c.l.b16 %v556
    %v731 = vunpack.c.h.b16 %v556
    %v732 = vunpack.c.l.b16 %v557
    %v733 = vunpack.c.h.b16 %v557
    %v734 = vunpack.c.l.b16 %v558
    %v735 = vunpack.c.h.b16 %v558
    %v736 = vunpack.c.l.b16 %v559
    %v737 = vunpack.c.h.b16 %v559
    %v738 = vunpack.c.l.b16 %v560
    %v739 = vunpack.c.h.b16 %v560
    %v740 = vunpack.c.l.b16 %v561
    %v741 = vunpack.c.h.b16 %v561
    %v742 = vunpack.c.l.b16 %v562
    %v743 = vunpack.c.h.b16 %v562
    %v744 = vunpack.c.l.b16 %v563
    %v745 = vunpack.c.h.b16 %v563
    %v746 = vunpack.c.l.b16 %v564
    %v747 = vunpack.c.h.b16 %v564
    %v748 = vunpack.c.l.b16 %v565
    %v749 = vunpack.c.h.b16 %v565
    %v750 = vunpack.c.l.b16 %v566
    %v751 = vunpack.c.h.b16 %v566
    %v752 = vunpack.c.l.b16 %v567
    %v753 = vunpack.c.h.b16 %v567
    %v754 = vunpack.c.l.b16 %v568
    %v755 = vunpack.c.h.b16 %v568
    %v756 = vunpack.c.l.b16 %v569
    %v757 = vunpack.c.h.b16 %v569
    %v758 = vunpack.c.l.b16 %v570
    %v759 = vunpack.c.h.b16 %v570
    %v760 = vunpack.c.l.b16 %v571
    %v761 = vunpack.c.h.b16 %v571
    %v762 = vunpack.c.l.b16 %v572
    %v763 = vunpack.c.h.b16 %v572
    %v764 = vunpack.c.l.b16 %v573
    %v765 = vunpack.c.h.b16 %v573
    %v766 = vunpack.c.l.b16 %v574
    %v767 = vunpack.c.h.b16 %v574
    %v768 = vunpack.c.l.b16 %v575
    %v769 = vunpack.c.h.b16 %v575
    %v770 = vunpack.c.l.b16 %v576
    %v771 = vunpack.c.h.b16 %v576
    %v772 = vunpack.c.l.b16 %v577
    %v773 = vunpack.c.h.b16 %v577
    %v774 = vunpack.c.l.b16 %v578
    %v775 = vunpack.c.h.b16 %v578
    %v776 = vunpack.c.l.b16 %v579
    %v777 = vunpack.c.h.b16 %v579
    %v778 = vunpack.c.l.b16 %v580
    %v779 = vunpack.c.h.b16 %v580
    %v780 = vunpack.c.l.b16 %v581
    %v781 = vunpack.c.h.b16 %v581
    %v782 = vunpack.c.l.b16 %v582
    %v783 = vunpack.c.h.b16 %v582
    %v784 = vunpack.c.l.b16 %v583
    %v785 = vunpack.c.h.b16 %v583
    %v786 = vunpack.c.l.b16 %v584
    %v787 = vunpack.c.h.b16 %v584
    %v788 = vunpack.c.l.b16 %v585
    %v789 = vunpack.c.h.b16 %v585
    %v790 = vunpack.c.l.b16 %v586
    %v791 = vunpack.c.h.b16 %v586
    %v792 = vunpack.c.l.b16 %v587
    %v793 = vunpack.c.h.b16 %v587
    %v794 = vunpack.c.l.b16 %v588
    %v795 = vunpack.c.h.b16 %v588
    %v796 = vunpack.c.l.b16 %v589
    %v797 = vunpack.c.h.b16 %v589
    %v798 = vunpack.c.l.b16 %v590
    %v799 = vunpack.c.h.b16 %v590
    %v800 = vunpack.c.l.b16 %v591
    %v801 = vunpack.c.h.b16 %v591
    %v802 = vunpack.c.l.b16 %v592
    %v803 = vunpack.c.h.b16 %v592
    %v804 = vunpack.c.l.b16 %v593
    %v805 = vunpack.c.h.b16 %v593
    %v806 = vunpack.c.l.b16 %v594
    %v807 = vunpack.c.h.b16 %v594
    %v808 = vunpack.c.l.b16 %v595
    %v809 = vunpack.c.h.b16 %v595
    %v810 = vpack.c.b16 %v686, %v682
    %v811 = vpack.c.b16 %v687, %v683
    %v812 = vpack.c.b16 %v688, %v684
    %v813 = vpack.c.b16 %v689, %v685
    %v814 = vpack.c.b16 %v694, %v690
    %v815 = vpack.c.b16 %v695, %v691
    %v816 = vpack.c.b16 %v696, %v692
    %v817 = vpack.c.b16 %v697, %v693
    %v818 = vpack.c.b16 %v702, %v698
    %v819 = vpack.c.b16 %v703, %v699
    %v820 = vpack.c.b16 %v704, %v700
    %v821 = vpack.c.b16 %v705, %v701
    %v822 = vpack.c.b16 %v710, %v706
    %v823 = vpack.c.b16 %v711, %v707
    %v824 = vpack.c.b16 %v712, %v708
    %v825 = vpack.c.b16 %v713, %v709
    %v826 = vpack.c.b16 %v718, %v714
    %v827 = vpack.c.b16 %v719, %v715
    %v828 = vpack.c.b16 %v720, %v716
    %v829 = vpack.c.b16 %v721, %v717
    %v830 = vpack.c.b16 %v726, %v722
    %v831 = vpack.c.b16 %v727, %v723
    %v832 = vpack.c.b16 %v728, %v724
    %v833 = vpack.c.b16 %v729, %v725
    %v834 = vpack.c.b16 %v734, %v730
    %v835 = vpack.c.b16 %v735, %v731
    %v836 = vpack.c.b16 %v736, %v732
    %v837 = vpack.c.b16 %v737, %v733
    %v838 = vpack.c.b16 %v742, %v738
    %v839 = vpack.c.b16 %v743, %v739
    %v840 = vpack.c.b16 %v744, %v740
    %v841 = vpack.c.b16 %v745, %v741
    %v842 = vpack.c.b16 %v750, %v746
    %v843 = vpack.c.b16 %v751, %v747
    %v844 = vpack.c.b16 %v752, %v748
    %v845 = vpack.c.b16 %v753, %v749
    %v846 = vpack.c.b16 %v758, %v754
    %v847 = vpack.c.b16 %v759, %v755
    %v848 = vpack.c.b16 %v760, %v756
    %v849 = vpack.c.b16 %v761, %v757
    %v850 = vpack.c.b16 %v766, %v762
    %v851 = vpack.c.b16 %v767, %v763
    %v852 = vpack.c.b16 %v768, %v764
    %v853 = vpack.c.b16 %v769, %v765
    %v854 = vpack.c.b16 %v774, %v770
    %v855 = vpack.c.b16 %v775, %v771
    %v856 = vpack.c.b16 %v776, %v772
    %v857 = vpack.c.b16 %v777, %v773
    %v858 = vpack.c.b16 %v782, %v778
    %v859 = vpack.c.b16 %v783, %v779
    %v860 = vpack.c.b16 %v784, %v780
    %v861 = vpack.c.b16 %v785, %v781
    %v862 = vpack.c.b16 %v790, %v786
    %v863 = vpack.c.b16 %v791, %v787
    %v864 = vpack.c.b16 %v792, %v788
    %v865 = vpack.c.b16 %v793, %v789
    %v866 = vpack.c.b16 %v798, %v794
    %v867 = vpack.c.b16 %v799, %v795
    %v868 = vpack.c.b16 %v800, %v796
    %v869 = vpack.c.b16 %v801, %v797
    %v870 = vpack.c.b16 %v806, %v802
    %v871 = vpack.c.b16 %v807, %v803
    %v872 = vpack.c.b16 %v808, %v804
    %v873 = vpack.c.b16 %v809, %v805
    %938 = vmatprep.subr.bf16.mxu0 %v839
    %939 = vmatpush1.bf16.msra.mxu0 %v838
    %940 = vmatprep.subr.bf16.mxu0 %v835
    %941 = vmatpush1.bf16.msra.mxu0 %v834
    %942 = vmatprep.subr.bf16.mxu0 %v831
    %943 = vmatpush1.bf16.msra.mxu0 %v830
    %944 = vmatprep.subr.bf16.mxu0 %v827
    %945 = vmatpush1.bf16.msra.mxu0 %v826
    %946 = vmatprep.subr.bf16.mxu0 %v823
    %947 = vmatpush1.bf16.msra.mxu0 %v822
    %948 = vmatprep.subr.bf16.mxu0 %v819
    %949 = vmatpush1.bf16.msra.mxu0 %v818
    %950 = vmatprep.subr.bf16.mxu0 %v815
    %951 = vmatpush1.bf16.msra.mxu0 %v814
    %952 = vmatprep.subr.bf16.mxu0 %v811
    %953 = vmatpush1.bf16.msra.mxu0 %v810
    %954 = vmatprep.subr.bf16.mxu0 %v871
    %955 = vmatpush2.bf16.msra.mxu0 %v870
    %956 = vmatprep.subr.bf16.mxu0 %v867
    %957 = vmatpush2.bf16.msra.mxu0 %v866
    %958 = vmatprep.subr.bf16.mxu0 %v863
    %959 = vmatpush2.bf16.msra.mxu0 %v862
    %960 = vmatprep.subr.bf16.mxu0 %v859
    %961 = vmatpush2.bf16.msra.mxu0 %v858
    %962 = vmatprep.subr.bf16.mxu0 %v855
    %963 = vmatpush2.bf16.msra.mxu0 %v854
    %964 = vmatprep.subr.bf16.mxu0 %v851
    %965 = vmatpush2.bf16.msra.mxu0 %v850
    %966 = vmatprep.subr.bf16.mxu0 %v847
    %967 = vmatpush2.bf16.msra.mxu0 %v846
    %968 = vmatprep.subr.bf16.mxu0 %v843
    %969 = vmatpush2.bf16.msra.mxu0 %v842
    %970 = vmatprep.mubr.bf16.mxu0 %v531
    %971 = vmatmul.mubr.bf16.gmra.mxu0 %v530
    %v972 = vpop.f32.mrf.mxu0
    %v973 = vadd.f32 %v601, %v972
    %v974 = vpop.f32.mrf.mxu0
    %v975 = vadd.f32 %v605, %v974
    %v976 = vpop.f32.mrf.mxu0
    %v977 = vpop.f32.mrf.mxu0
    %978 = vdwg.mxu0
    %979 = vmatprep.subr.bf16.mxu0 %v841
    %980 = vmatpush1.bf16.msra.mxu0 %v840
    %981 = vmatprep.subr.bf16.mxu0 %v837
    %982 = vmatpush1.bf16.msra.mxu0 %v836
    %983 = vmatprep.subr.bf16.mxu0 %v833
    %984 = vmatpush1.bf16.msra.mxu0 %v832
    %985 = vmatprep.subr.bf16.mxu0 %v829
    %986 = vmatpush1.bf16.msra.mxu0 %v828
    %987 = vmatprep.subr.bf16.mxu0 %v825
    %988 = vmatpush1.bf16.msra.mxu0 %v824
    %989 = vmatprep.subr.bf16.mxu0 %v821
    %990 = vmatpush1.bf16.msra.mxu0 %v820
    %991 = vmatprep.subr.bf16.mxu0 %v817
    %992 = vmatpush1.bf16.msra.mxu0 %v816
    %993 = vmatprep.subr.bf16.mxu0 %v813
    %994 = vmatpush1.bf16.msra.mxu0 %v812
    %995 = vmatprep.subr.bf16.mxu0 %v873
    %996 = vmatpush2.bf16.msra.mxu0 %v872
    %997 = vmatprep.subr.bf16.mxu0 %v869
    %998 = vmatpush2.bf16.msra.mxu0 %v868
    %999 = vmatprep.subr.bf16.mxu0 %v865
    %1000 = vmatpush2.bf16.msra.mxu0 %v864
    %1001 = vmatprep.subr.bf16.mxu0 %v861
    %1002 = vmatpush2.bf16.msra.mxu0 %v860
    %1003 = vmatprep.subr.bf16.mxu0 %v857
    %1004 = vmatpush2.bf16.msra.mxu0 %v856
    %1005 = vmatprep.subr.bf16.mxu0 %v853
    %1006 = vmatpush2.bf16.msra.mxu0 %v852
    %1007 = vmatprep.subr.bf16.mxu0 %v849
    %1008 = vmatpush2.bf16.msra.mxu0 %v848
    %1009 = vmatprep.subr.bf16.mxu0 %v845
    %1010 = vmatpush2.bf16.msra.mxu0 %v844
    %1011 = vmatprep.mubr.bf16.mxu0 %v531
    %1012 = vmatmul.mubr.bf16.gmra.mxu0 %v530
    %v1013 = vpop.f32.mrf.mxu0
    %v1014 = vadd.f32 %v609, %v1013
    %v1015 = vpop.f32.mrf.mxu0
    %v1016 = vadd.f32 %v613, %v1015
    %v1017 = vpop.f32.mrf.mxu0
    %v1018 = vpop.f32.mrf.mxu0
    %1019 = vdwg.mxu0
    %v1020 = vld [vmem:[%s9] sm:$0xf]
    %v1021 = vld [vmem:[#allocation14] sm:$0xf]
    %v1022 = vrot.slane %v973, 4
    %v1023 = vadd.f32 %v973, %v1022
    %v1024 = vrot.slane %v1023, 2
    %v1025 = vadd.f32 %v1023, %v1024
    %v1026 = vrot.slane %v1025, 1
    %v1027 = vadd.f32 %v1025, %v1026
    %v1028 = vrot.slane %v975, 4
    %v1029 = vadd.f32 %v975, %v1028
    %v1030 = vrot.slane %v1029, 2
    %v1031 = vadd.f32 %v1029, %v1030
    %v1032 = vrot.slane %v1031, 1
    %v1033 = vadd.f32 %v1031, %v1032
    %v1034 = vrot.slane %v1014, 4
    %v1035 = vadd.f32 %v1014, %v1034
    %v1036 = vrot.slane %v1035, 2
    %v1037 = vadd.f32 %v1035, %v1036
    %v1038 = vrot.slane %v1037, 1
    %v1039 = vadd.f32 %v1037, %v1038
    %v1040 = vrot.slane %v1016, 4
    %v1041 = vadd.f32 %v1016, %v1040
    %v1042 = vrot.slane %v1041, 2
    %v1043 = vadd.f32 %v1041, %v1042
    %v1044 = vrot.slane %v1043, 1
    %v1045 = vadd.f32 %v1043, %v1044
    %v1046 = vmul.f32 %v1027, 0.125
    %v1047 = vmul.f32 %v1033, 0.125
    %v1048 = vmul.f32 %v1039, 0.125
    %v1049 = vmul.f32 %v1045, 0.125
    %v1050 = vmul.f32 %v973, %v973
    %v1051 = vmul.f32 %v975, %v975
    %v1052 = vmul.f32 %v1014, %v1014
    %v1053 = vmul.f32 %v1016, %v1016
    %v1054 = vrot.slane %v1050, 4
    %v1055 = vadd.f32 %v1050, %v1054
    %v1056 = vrot.slane %v1055, 2
    %v1057 = vadd.f32 %v1055, %v1056
    %v1058 = vrot.slane %v1057, 1
    %v1059 = vadd.f32 %v1057, %v1058
    %v1060 = vrot.slane %v1051, 4
    %v1061 = vadd.f32 %v1051, %v1060
    %v1062 = vrot.slane %v1061, 2
    %v1063 = vadd.f32 %v1061, %v1062
    %v1064 = vrot.slane %v1063, 1
    %v1065 = vadd.f32 %v1063, %v1064
    %v1066 = vrot.slane %v1052, 4
    %v1067 = vadd.f32 %v1052, %v1066
    %v1068 = vrot.slane %v1067, 2
    %v1069 = vadd.f32 %v1067, %v1068
    %v1070 = vrot.slane %v1069, 1
    %v1071 = vadd.f32 %v1069, %v1070
    %v1072 = vrot.slane %v1053, 4
    %v1073 = vadd.f32 %v1053, %v1072
    %v1074 = vrot.slane %v1073, 2
    %v1075 = vadd.f32 %v1073, %v1074
    %v1076 = vrot.slane %v1075, 1
    %v1077 = vadd.f32 %v1075, %v1076
    %v1078 = vmul.f32 %v1059, 0.125
    %v1079 = vmul.f32 %v1065, 0.125
    %v1080 = vmul.f32 %v1071, 0.125
    %v1081 = vmul.f32 %v1077, 0.125
    %v1082 = vmul.f32 %v1046, %v1046
    %v1083 = vmul.f32 %v1047, %v1047
    %v1084 = vmul.f32 %v1048, %v1048
    %v1085 = vmul.f32 %v1049, %v1049
    %v1086 = vsub.f32 %v1078, %v1082
    %v1087 = vsub.f32 %v1079, %v1083
    %v1088 = vsub.f32 %v1080, %v1084
    %v1089 = vsub.f32 %v1081, %v1085
    %v1090 = vadd.f32 %v1086, 1e-05
    %v1091 = vadd.f32 %v1087, 1e-05
    %v1092 = vadd.f32 %v1088, 1e-05
    %v1093 = vadd.f32 %v1089, 1e-05
    %v1094 = vrsqrt.pop %v1090
    %v1095 = vrsqrt.pop %v1091
    %v1096 = vrsqrt.pop %v1092
    %v1097 = vrsqrt.pop %v1093
    %v1102 = vcombine.low %v1094, %v1095
    %v1103 = vcombine.low %v1096, %v1097
    %v1105 = vunpack.c.l.s4 1966171168
    %v1106 = vunpack.c.0.s8 %v1105
    %v1107 = vlaneseq
    %v1108 = vshrl.u32 %v1107, 7
    %v1109 = vsub.s32 %v1106, %v1108
    %v1110 = vrot.slane %v1102, %v1109
    %v1112 = vunpack.c.l.s4 1966171168
    %v1113 = vunpack.c.0.s8 %v1112
    %v1114 = vlaneseq
    %v1115 = vshrl.u32 %v1114, 7
    %v1116 = vsub.s32 %v1113, %v1115
    %v1117 = vrot.slane %v1103, %v1116
    %v1118 = vcombine.low %v1110, %v1117
    %v1120 = vunpack.c.l.s4 1966171168
    %v1121 = vunpack.c.0.s8 %v1120
    %v1122 = vlaneseq
    %v1123 = vshrl.u32 %v1122, 7
    %v1124 = vsub.s32 %v1121, %v1123
    %v1125 = vrot.slane %v1118, %v1124
    %v1127 = vmul.f32 %v1020, %v1125
    %v1129 = vlaneseq
    %v1130 = vshrl.u32 %v1129, 7
    %v1131 = vsub.s32 0, %v1130
    %v1132 = vrot.slane %v1127, %v1131
    %v1133 = vlaneseq
    %v1134 = vshrl.u32 %v1133, 7
    %v1135 = vsub.s32 1, %v1134
    %v1136 = vrot.slane %v1127, %v1135
    %v1137 = vlaneseq
    %v1138 = vshrl.u32 %v1137, 7
    %v1139 = vsub.s32 2, %v1138
    %v1140 = vrot.slane %v1127, %v1139
    %v1141 = vlaneseq
    %v1142 = vshrl.u32 %v1141, 7
    %v1143 = vsub.s32 3, %v1142
    %v1144 = vrot.slane %v1127, %v1143
    %v1149 = vmul.f32 %v1046, %v1132
    %v1150 = vmul.f32 %v1047, %v1136
    %v1151 = vmul.f32 %v1048, %v1140
    %v1152 = vmul.f32 %v1049, %v1144
    %v1157 = vcombine.low %v1149, %v1150
    %v1158 = vcombine.low %v1151, %v1152
    %v1160 = vunpack.c.l.s4 1966171168
    %v1161 = vunpack.c.0.s8 %v1160
    %v1162 = vlaneseq
    %v1163 = vshrl.u32 %v1162, 7
    %v1164 = vsub.s32 %v1161, %v1163
    %v1165 = vrot.slane %v1157, %v1164
    %v1167 = vunpack.c.l.s4 1966171168
    %v1168 = vunpack.c.0.s8 %v1167
    %v1169 = vlaneseq
    %v1170 = vshrl.u32 %v1169, 7
    %v1171 = vsub.s32 %v1168, %v1170
    %v1172 = vrot.slane %v1158, %v1171
    %v1173 = vcombine.low %v1165, %v1172
    %v1175 = vunpack.c.l.s4 1966171168
    %v1176 = vunpack.c.0.s8 %v1175
    %v1177 = vlaneseq
    %v1178 = vshrl.u32 %v1177, 7
    %v1179 = vsub.s32 %v1176, %v1178
    %v1180 = vrot.slane %v1173, %v1179
    %v1182 = vsub.f32 %v1021, %v1180
    %v1183 = vmul.f32 %v973, %v1132
    %v1184 = vmul.f32 %v975, %v1136
    %v1185 = vmul.f32 %v1014, %v1140
    %v1186 = vmul.f32 %v1016, %v1144
    %v1188 = vlaneseq
    %v1189 = vshrl.u32 %v1188, 7
    %v1190 = vsub.s32 0, %v1189
    %v1191 = vrot.slane %v1182, %v1190
    %v1192 = vlaneseq
    %v1193 = vshrl.u32 %v1192, 7
    %v1194 = vsub.s32 1, %v1193
    %v1195 = vrot.slane %v1182, %v1194
    %v1196 = vlaneseq
    %v1197 = vshrl.u32 %v1196, 7
    %v1198 = vsub.s32 2, %v1197
    %v1199 = vrot.slane %v1182, %v1198
    %v1200 = vlaneseq
    %v1201 = vshrl.u32 %v1200, 7
    %v1202 = vsub.s32 3, %v1201
    %v1203 = vrot.slane %v1182, %v1202
    %v1208 = vadd.f32 %v1183, %v1191
    %v1209 = vadd.f32 %v1184, %v1195
    %v1210 = vadd.f32 %v1185, %v1199
    %v1211 = vadd.f32 %v1186, %v1203
    %v1212 = vmax.f32 %v1208, 0.0
    %v1213 = vmax.f32 %v1209, 0.0
    %v1214 = vmax.f32 %v1210, 0.0
    %v1215 = vmax.f32 %v1211, 0.0
    %v1216 = vpack.c.bf16 %v1212, %v1212
    %v1217 = vpack.c.bf16 %v1213, %v1213
    %v1218 = vpack.c.bf16 %v1214, %v1214
    %v1219 = vpack.c.bf16 %v1215, %v1215
    %v1220 = vld [vmem:[#allocation16] sm:$0xff]
    %v1221 = vld [vmem:[#allocation16 + $0x8] sm:$0xff]
    %v1222 = vld [vmem:[#allocation16 + $0x10] sm:$0xff]
    %v1223 = vld [vmem:[#allocation16 + $0x18] sm:$0xf]
    %v1224 = vld [vmem:[#allocation16 + $0x1c] sm:$0xff]
    %v1225 = vld [vmem:[#allocation16 + $0x24] sm:$0xff]
    %v1226 = vld [vmem:[#allocation16 + $0x2c] sm:$0xff]
    %v1227 = vld [vmem:[#allocation16 + $0x34] sm:$0xf]
    %v1228 = vld [vmem:[#allocation16 + $0x38] sm:$0xff]
    %v1229 = vld [vmem:[#allocation16 + $0x40] sm:$0xff]
    %v1230 = vld [vmem:[#allocation16 + $0x48] sm:$0xff]
    %v1231 = vld [vmem:[#allocation16 + $0x50] sm:$0xf]
    %v1232 = vld [vmem:[#allocation16 + $0x54] sm:$0xff]
    %v1233 = vld [vmem:[#allocation16 + $0x5c] sm:$0xff]
    %v1234 = vld [vmem:[#allocation16 + $0x64] sm:$0xff]
    %v1235 = vld [vmem:[#allocation16 + $0x6c] sm:$0xf]
    %v1236 = vld [vmem:[#allocation16 + $0x70] sm:$0xff]
    %v1237 = vld [vmem:[#allocation16 + $0x78] sm:$0xff]
    %v1238 = vld [vmem:[#allocation16 + $0x80] sm:$0xff]
    %v1239 = vld [vmem:[#allocation16 + $0x88] sm:$0xf]
    %v1240 = vld [vmem:[#allocation16 + $0x8c] sm:$0xff]
    %v1241 = vld [vmem:[#allocation16 + $0x94] sm:$0xff]
    %v1242 = vld [vmem:[#allocation16 + $0x9c] sm:$0xff]
    %v1243 = vld [vmem:[#allocation16 + $0xa4] sm:$0xf]
    %v1244 = vld [vmem:[#allocation16 + $0xa8] sm:$0xff]
    %v1245 = vld [vmem:[#allocation16 + $0xb0] sm:$0xff]
    %v1246 = vld [vmem:[#allocation16 + $0xb8] sm:$0xff]
    %v1247 = vld [vmem:[#allocation16 + $0xc0] sm:$0xf]
    %v1248 = vld [vmem:[#allocation16 + $0xc4] sm:$0xff]
    %v1249 = vld [vmem:[#allocation16 + $0xcc] sm:$0xff]
    %v1250 = vld [vmem:[#allocation16 + $0xd4] sm:$0xff]
    %v1251 = vld [vmem:[#allocation16 + $0xdc] sm:$0xf]
    %v1252 = vld [vmem:[#allocation16 + $0xe0] sm:$0xff]
    %v1253 = vld [vmem:[#allocation16 + $0xe8] sm:$0xff]
    %v1254 = vld [vmem:[#allocation16 + $0xf0] sm:$0xff]
    %v1255 = vld [vmem:[#allocation16 + $0xf8] sm:$0xf]
    %v1256 = vld [vmem:[#allocation16 + $0xfc] sm:$0xff]
    %v1257 = vld [vmem:[#allocation16 + $0x104] sm:$0xff]
    %v1258 = vld [vmem:[#allocation16 + $0x10c] sm:$0xff]
    %v1259 = vld [vmem:[#allocation16 + $0x114] sm:$0xf]
    %v1260 = vld [vmem:[#allocation16 + $0x118] sm:$0xff]
    %v1261 = vld [vmem:[#allocation16 + $0x120] sm:$0xff]
    %v1262 = vld [vmem:[#allocation16 + $0x128] sm:$0xff]
    %v1263 = vld [vmem:[#allocation16 + $0x130] sm:$0xf]
    %v1264 = vld [vmem:[#allocation16 + $0x134] sm:$0xff]
    %v1265 = vld [vmem:[#allocation16 + $0x13c] sm:$0xff]
    %v1266 = vld [vmem:[#allocation16 + $0x144] sm:$0xff]
    %v1267 = vld [vmem:[#allocation16 + $0x14c] sm:$0xf]
    %v1268 = vld [vmem:[#allocation16 + $0x150] sm:$0xff]
    %v1269 = vld [vmem:[#allocation16 + $0x158] sm:$0xff]
    %v1270 = vld [vmem:[#allocation16 + $0x160] sm:$0xff]
    %v1271 = vld [vmem:[#allocation16 + $0x168] sm:$0xf]
    %v1272 = vld [vmem:[#allocation16 + $0x16c] sm:$0xff]
    %v1273 = vld [vmem:[#allocation16 + $0x174] sm:$0xff]
    %v1274 = vld [vmem:[#allocation16 + $0x17c] sm:$0xff]
    %v1275 = vld [vmem:[#allocation16 + $0x184] sm:$0xf]
    %v1276 = vld [vmem:[#allocation16 + $0x188] sm:$0xff]
    %v1277 = vld [vmem:[#allocation16 + $0x190] sm:$0xff]
    %v1278 = vld [vmem:[#allocation16 + $0x198] sm:$0xff]
    %v1279 = vld [vmem:[#allocation16 + $0x1a0] sm:$0xf]
    %v1280 = vld [vmem:[#allocation16 + $0x1a4] sm:$0xff]
    %v1281 = vld [vmem:[#allocation16 + $0x1ac] sm:$0xff]
    %v1282 = vld [vmem:[#allocation16 + $0x1b4] sm:$0xff]
    %v1283 = vld [vmem:[#allocation16 + $0x1bc] sm:$0xf]
    %v1284 = vld [vmem:[#allocation16 + $0x1c0] sm:$0xff]
    %v1285 = vld [vmem:[#allocation16 + $0x1c8] sm:$0xff]
    %v1286 = vld [vmem:[#allocation16 + $0x1d0] sm:$0xff]
    %v1287 = vld [vmem:[#allocation16 + $0x1d8] sm:$0xf]
    %v1288 = vld [vmem:[#allocation16 + $0x1dc] sm:$0xff]
    %v1289 = vld [vmem:[#allocation16 + $0x1e4] sm:$0xff]
    %v1290 = vld [vmem:[#allocation16 + $0x1ec] sm:$0xff]
    %v1291 = vld [vmem:[#allocation16 + $0x1f4] sm:$0xf]
    %v1292 = vld [vmem:[#allocation16 + $0x1f8] sm:$0xff]
    %v1293 = vld [vmem:[#allocation16 + $0x200] sm:$0xff]
    %v1294 = vld [vmem:[#allocation16 + $0x208] sm:$0xff]
    %v1295 = vld [vmem:[#allocation16 + $0x210] sm:$0xf]
    %v1296 = vld [vmem:[#allocation16 + $0x214] sm:$0xff]
    %v1297 = vld [vmem:[#allocation16 + $0x21c] sm:$0xff]
    %v1298 = vld [vmem:[#allocation16 + $0x224] sm:$0xff]
    %v1299 = vld [vmem:[#allocation16 + $0x22c] sm:$0xf]
    %v1300 = vld [vmem:[#allocation16 + $0x230] sm:$0xff]
    %v1301 = vld [vmem:[#allocation16 + $0x238] sm:$0xff]
    %v1302 = vld [vmem:[#allocation16 + $0x240] sm:$0xff]
    %v1303 = vld [vmem:[#allocation16 + $0x248] sm:$0xf]
    %v1304 = vld [vmem:[#allocation16 + $0x24c] sm:$0xff]
    %v1305 = vld [vmem:[#allocation16 + $0x254] sm:$0xff]
    %v1306 = vld [vmem:[#allocation16 + $0x25c] sm:$0xff]
    %v1307 = vld [vmem:[#allocation16 + $0x264] sm:$0xf]
    %v1308 = vld [vmem:[#allocation16 + $0x268] sm:$0xff]
    %v1309 = vld [vmem:[#allocation16 + $0x270] sm:$0xff]
    %v1310 = vld [vmem:[#allocation16 + $0x278] sm:$0xff]
    %v1311 = vld [vmem:[#allocation16 + $0x280] sm:$0xf]
    %v1312 = vld [vmem:[#allocation16 + $0x284] sm:$0xff]
    %v1313 = vld [vmem:[#allocation16 + $0x28c] sm:$0xff]
    %v1314 = vld [vmem:[#allocation16 + $0x294] sm:$0xff]
    %v1315 = vld [vmem:[#allocation16 + $0x29c] sm:$0xf]
    %v1316 = vld [vmem:[#allocation16 + $0x2a0] sm:$0xff]
    %v1317 = vld [vmem:[#allocation16 + $0x2a8] sm:$0xff]
    %v1318 = vld [vmem:[#allocation16 + $0x2b0] sm:$0xff]
    %v1319 = vld [vmem:[#allocation16 + $0x2b8] sm:$0xf]
    %v1320 = vld [vmem:[#allocation16 + $0x2bc] sm:$0xff]
    %v1321 = vld [vmem:[#allocation16 + $0x2c4] sm:$0xff]
    %v1322 = vld [vmem:[#allocation16 + $0x2cc] sm:$0xff]
    %v1323 = vld [vmem:[#allocation16 + $0x2d4] sm:$0xf]
    %v1324 = vld [vmem:[#allocation16 + $0x2d8] sm:$0xff]
    %v1325 = vld [vmem:[#allocation16 + $0x2e0] sm:$0xff]
    %v1326 = vld [vmem:[#allocation16 + $0x2e8] sm:$0xff]
    %v1327 = vld [vmem:[#allocation16 + $0x2f0] sm:$0xf]
    %v1328 = vld [vmem:[#allocation16 + $0x2f4] sm:$0xff]
    %v1329 = vld [vmem:[#allocation16 + $0x2fc] sm:$0xff]
    %v1330 = vld [vmem:[#allocation16 + $0x304] sm:$0xff]
    %v1331 = vld [vmem:[#allocation16 + $0x30c] sm:$0xf]
    %v1332 = vld [vmem:[#allocation16 + $0x310] sm:$0xff]
    %v1333 = vld [vmem:[#allocation16 + $0x318] sm:$0xff]
    %v1334 = vld [vmem:[#allocation16 + $0x320] sm:$0xff]
    %v1335 = vld [vmem:[#allocation16 + $0x328] sm:$0xf]
    %v1336 = vld [vmem:[#allocation16 + $0x32c] sm:$0xff]
    %v1337 = vld [vmem:[#allocation16 + $0x334] sm:$0xff]
    %v1338 = vld [vmem:[#allocation16 + $0x33c] sm:$0xff]
    %v1339 = vld [vmem:[#allocation16 + $0x344] sm:$0xf]
    %v1340 = vld [vmem:[#allocation16 + $0x348] sm:$0xff]
    %v1341 = vld [vmem:[#allocation16 + $0x350] sm:$0xff]
    %v1342 = vld [vmem:[#allocation16 + $0x358] sm:$0xff]
    %v1343 = vld [vmem:[#allocation16 + $0x360] sm:$0xf]
    %v1344 = vld [vmem:[#allocation16 + $0x364] sm:$0xff]
    %v1345 = vld [vmem:[#allocation16 + $0x36c] sm:$0xff]
    %v1346 = vld [vmem:[#allocation16 + $0x374] sm:$0xff]
    %v1347 = vld [vmem:[#allocation16 + $0x37c] sm:$0xf]
    %v1348 = vld [vmem:[#allocation16 + $0x380] sm:$0xff]
    %v1349 = vld [vmem:[#allocation16 + $0x388] sm:$0xff]
    %v1350 = vld [vmem:[#allocation16 + $0x390] sm:$0xff]
    %v1351 = vld [vmem:[#allocation16 + $0x398] sm:$0xf]
    %v1352 = vld [vmem:[#allocation16 + $0x39c] sm:$0xff]
    %v1353 = vld [vmem:[#allocation16 + $0x3a4] sm:$0xff]
    %v1354 = vld [vmem:[#allocation16 + $0x3ac] sm:$0xff]
    %v1355 = vld [vmem:[#allocation16 + $0x3b4] sm:$0xf]
    %v1356 = vld [vmem:[#allocation16 + $0x3b8] sm:$0xff]
    %v1357 = vld [vmem:[#allocation16 + $0x3c0] sm:$0xff]
    %v1358 = vld [vmem:[#allocation16 + $0x3c8] sm:$0xff]
    %v1359 = vld [vmem:[#allocation16 + $0x3d0] sm:$0xf]
    %v1360 = vld [vmem:[#allocation16 + $0x3d4] sm:$0xff]
    %v1361 = vld [vmem:[#allocation16 + $0x3dc] sm:$0xff]
    %v1362 = vld [vmem:[#allocation16 + $0x3e4] sm:$0xff]
    %v1363 = vld [vmem:[#allocation16 + $0x3ec] sm:$0xf]
    %v1364 = vld [vmem:[#allocation16 + $0x3f0] sm:$0xff]
    %v1365 = vld [vmem:[#allocation16 + $0x3f8] sm:$0xff]
    %v1366 = vld [vmem:[#allocation16 + $0x400] sm:$0xff]
    %v1367 = vld [vmem:[#allocation16 + $0x408] sm:$0xf]
    %v1368 = vld [vmem:[#allocation16 + $0x40c] sm:$0xff]
    %v1369 = vld [vmem:[#allocation16 + $0x414] sm:$0xff]
    %v1370 = vld [vmem:[#allocation16 + $0x41c] sm:$0xff]
    %v1371 = vld [vmem:[#allocation16 + $0x424] sm:$0xf]
    %v1372 = vld [vmem:[#allocation16 + $0x428] sm:$0xff]
    %v1373 = vld [vmem:[#allocation16 + $0x430] sm:$0xff]
    %v1374 = vld [vmem:[#allocation16 + $0x438] sm:$0xff]
    %v1375 = vld [vmem:[#allocation16 + $0x440] sm:$0xf]
    %v1376 = vld [vmem:[#allocation16 + $0x444] sm:$0xff]
    %v1377 = vld [vmem:[#allocation16 + $0x44c] sm:$0xff]
    %v1378 = vld [vmem:[#allocation16 + $0x454] sm:$0xff]
    %v1379 = vld [vmem:[#allocation16 + $0x45c] sm:$0xf]
    %v1380 = vld [vmem:[#allocation16 + $0x460] sm:$0xff]
    %v1381 = vld [vmem:[#allocation16 + $0x468] sm:$0xff]
    %v1382 = vld [vmem:[#allocation16 + $0x470] sm:$0xff]
    %v1383 = vld [vmem:[#allocation16 + $0x478] sm:$0xf]
    %v1384 = vld [vmem:[#allocation16 + $0x47c] sm:$0xff]
    %v1385 = vld [vmem:[#allocation16 + $0x484] sm:$0xff]
    %v1386 = vld [vmem:[#allocation16 + $0x48c] sm:$0xff]
    %v1387 = vld [vmem:[#allocation16 + $0x494] sm:$0xf]
    %v1388 = vld [vmem:[#allocation16 + $0x498] sm:$0xff]
    %v1389 = vld [vmem:[#allocation16 + $0x4a0] sm:$0xff]
    %v1390 = vld [vmem:[#allocation16 + $0x4a8] sm:$0xff]
    %v1391 = vld [vmem:[#allocation16 + $0x4b0] sm:$0xf]
    %v1392 = vld [vmem:[#allocation16 + $0x4b4] sm:$0xff]
    %v1393 = vld [vmem:[#allocation16 + $0x4bc] sm:$0xff]
    %v1394 = vld [vmem:[#allocation16 + $0x4c4] sm:$0xff]
    %v1395 = vld [vmem:[#allocation16 + $0x4cc] sm:$0xf]
    %v1396 = vld [vmem:[#allocation16 + $0x4d0] sm:$0xff]
    %v1397 = vld [vmem:[#allocation16 + $0x4d8] sm:$0xff]
    %v1398 = vld [vmem:[#allocation16 + $0x4e0] sm:$0xff]
    %v1399 = vld [vmem:[#allocation16 + $0x4e8] sm:$0xf]
    %v1400 = vld [vmem:[#allocation16 + $0x4ec] sm:$0xff]
    %v1401 = vld [vmem:[#allocation16 + $0x4f4] sm:$0xff]
    %v1402 = vld [vmem:[#allocation16 + $0x4fc] sm:$0xff]
    %v1403 = vld [vmem:[#allocation16 + $0x504] sm:$0xf]
    %v1404 = vld [vmem:[#allocation16 + $0x508] sm:$0xff]
    %v1405 = vld [vmem:[#allocation16 + $0x510] sm:$0xff]
    %v1406 = vld [vmem:[#allocation16 + $0x518] sm:$0xff]
    %v1407 = vld [vmem:[#allocation16 + $0x520] sm:$0xf]
    %v1408 = vld [vmem:[#allocation16 + $0x524] sm:$0xff]
    %v1409 = vld [vmem:[#allocation16 + $0x52c] sm:$0xff]
    %v1410 = vld [vmem:[#allocation16 + $0x534] sm:$0xff]
    %v1411 = vld [vmem:[#allocation16 + $0x53c] sm:$0xf]
    %v1412 = vld [vmem:[#allocation16 + $0x540] sm:$0xff]
    %v1413 = vld [vmem:[#allocation16 + $0x548] sm:$0xff]
    %v1414 = vld [vmem:[#allocation16 + $0x550] sm:$0xff]
    %v1415 = vld [vmem:[#allocation16 + $0x558] sm:$0xf]
    %v1416 = vld [vmem:[#allocation16 + $0x55c] sm:$0xff]
    %v1417 = vld [vmem:[#allocation16 + $0x564] sm:$0xff]
    %v1418 = vld [vmem:[#allocation16 + $0x56c] sm:$0xff]
    %v1419 = vld [vmem:[#allocation16 + $0x574] sm:$0xf]
    %v1420 = vld [vmem:[#allocation16 + $0x578] sm:$0xff]
    %v1421 = vld [vmem:[#allocation16 + $0x580] sm:$0xff]
    %v1422 = vld [vmem:[#allocation16 + $0x588] sm:$0xff]
    %v1423 = vld [vmem:[#allocation16 + $0x590] sm:$0xf]
    %v1424 = vld [vmem:[#allocation16 + $0x594] sm:$0xff]
    %v1425 = vld [vmem:[#allocation16 + $0x59c] sm:$0xff]
    %v1426 = vld [vmem:[#allocation16 + $0x5a4] sm:$0xff]
    %v1427 = vld [vmem:[#allocation16 + $0x5ac] sm:$0xf]
    %v1428 = vld [vmem:[#allocation16 + $0x5b0] sm:$0xff]
    %v1429 = vld [vmem:[#allocation16 + $0x5b8] sm:$0xff]
    %v1430 = vld [vmem:[#allocation16 + $0x5c0] sm:$0xff]
    %v1431 = vld [vmem:[#allocation16 + $0x5c8] sm:$0xf]
    %v1432 = vld [vmem:[#allocation16 + $0x5cc] sm:$0xff]
    %v1433 = vld [vmem:[#allocation16 + $0x5d4] sm:$0xff]
    %v1434 = vld [vmem:[#allocation16 + $0x5dc] sm:$0xff]
    %v1435 = vld [vmem:[#allocation16 + $0x5e4] sm:$0xf]
    %v1436 = vld [vmem:[#allocation16 + $0x5e8] sm:$0xff]
    %v1437 = vld [vmem:[#allocation16 + $0x5f0] sm:$0xff]
    %v1438 = vld [vmem:[#allocation16 + $0x5f8] sm:$0xff]
    %v1439 = vld [vmem:[#allocation16 + $0x600] sm:$0xf]
    %v1440 = vld [vmem:[#allocation16 + $0x604] sm:$0xff]
    %v1441 = vld [vmem:[#allocation16 + $0x60c] sm:$0xff]
    %v1442 = vld [vmem:[#allocation16 + $0x614] sm:$0xff]
    %v1443 = vld [vmem:[#allocation16 + $0x61c] sm:$0xf]
    %v1444 = vld [vmem:[#allocation16 + $0x620] sm:$0xff]
    %v1445 = vld [vmem:[#allocation16 + $0x628] sm:$0xff]
    %v1446 = vld [vmem:[#allocation16 + $0x630] sm:$0xff]
    %v1447 = vld [vmem:[#allocation16 + $0x638] sm:$0xf]
    %v1448 = vld [vmem:[#allocation16 + $0x63c] sm:$0xff]
    %v1449 = vld [vmem:[#allocation16 + $0x644] sm:$0xff]
    %v1450 = vld [vmem:[#allocation16 + $0x64c] sm:$0xff]
    %v1451 = vld [vmem:[#allocation16 + $0x654] sm:$0xf]
    %v1452 = vld [vmem:[#allocation16 + $0x658] sm:$0xff]
    %v1453 = vld [vmem:[#allocation16 + $0x660] sm:$0xff]
    %v1454 = vld [vmem:[#allocation16 + $0x668] sm:$0xff]
    %v1455 = vld [vmem:[#allocation16 + $0x670] sm:$0xf]
    %v1456 = vld [vmem:[#allocation16 + $0x674] sm:$0xff]
    %v1457 = vld [vmem:[#allocation16 + $0x67c] sm:$0xff]
    %v1458 = vld [vmem:[#allocation16 + $0x684] sm:$0xff]
    %v1459 = vld [vmem:[#allocation16 + $0x68c] sm:$0xf]
    %v1460 = vld [vmem:[#allocation16 + $0x690] sm:$0xff]
    %v1461 = vld [vmem:[#allocation16 + $0x698] sm:$0xff]
    %v1462 = vld [vmem:[#allocation16 + $0x6a0] sm:$0xff]
    %v1463 = vld [vmem:[#allocation16 + $0x6a8] sm:$0xf]
    %v1464 = vld [vmem:[#allocation16 + $0x6ac] sm:$0xff]
    %v1465 = vld [vmem:[#allocation16 + $0x6b4] sm:$0xff]
    %v1466 = vld [vmem:[#allocation16 + $0x6bc] sm:$0xff]
    %v1467 = vld [vmem:[#allocation16 + $0x6c4] sm:$0xf]
    %v1468 = vld [vmem:[#allocation16 + $0x6c8] sm:$0xff]
    %v1469 = vld [vmem:[#allocation16 + $0x6d0] sm:$0xff]
    %v1470 = vld [vmem:[#allocation16 + $0x6d8] sm:$0xff]
    %v1471 = vld [vmem:[#allocation16 + $0x6e0] sm:$0xf]
    %v1472 = vld [vmem:[#allocation16 + $0x6e4] sm:$0xff]
    %v1473 = vld [vmem:[#allocation16 + $0x6ec] sm:$0xff]
    %v1474 = vld [vmem:[#allocation16 + $0x6f4] sm:$0xff]
    %v1475 = vld [vmem:[#allocation16 + $0x6fc] sm:$0xf]
    %v1476 = vld [vmem:[%s12] sm:$0xff]
    %v1478 = vlaneseq
    %v1479 = vshrl.u32 %v1478, 7
    %v1480 = vsub.s32 0, %v1479
    %v1481 = vrot.slane %v1476, %v1480
    %v1482 = vlaneseq
    %v1483 = vshrl.u32 %v1482, 7
    %v1484 = vsub.s32 1, %v1483
    %v1485 = vrot.slane %v1476, %v1484
    %v1486 = vlaneseq
    %v1487 = vshrl.u32 %v1486, 7
    %v1488 = vsub.s32 2, %v1487
    %v1489 = vrot.slane %v1476, %v1488
    %v1490 = vlaneseq
    %v1491 = vshrl.u32 %v1490, 7
    %v1492 = vsub.s32 3, %v1491
    %v1493 = vrot.slane %v1476, %v1492
    %v1494 = vlaneseq
    %v1495 = vshrl.u32 %v1494, 7
    %v1496 = vsub.s32 4, %v1495
    %v1497 = vrot.slane %v1476, %v1496
    %v1498 = vlaneseq
    %v1499 = vshrl.u32 %v1498, 7
    %v1500 = vsub.s32 5, %v1499
    %v1501 = vrot.slane %v1476, %v1500
    %v1502 = vlaneseq
    %v1503 = vshrl.u32 %v1502, 7
    %v1504 = vsub.s32 6, %v1503
    %v1505 = vrot.slane %v1476, %v1504
    %v1769 = vunpack.c.l.b16 %v1220
    %v1770 = vunpack.c.h.b16 %v1220
    %v1771 = vunpack.c.l.b16 %v1221
    %v1772 = vunpack.c.h.b16 %v1221
    %v1773 = vunpack.c.l.b16 %v1222
    %v1774 = vunpack.c.h.b16 %v1222
    %v1775 = vunpack.c.l.b16 %v1223
    %v1776 = vunpack.c.l.b16 %v1224
    %v1777 = vunpack.c.h.b16 %v1224
    %v1778 = vunpack.c.l.b16 %v1225
    %v1779 = vunpack.c.h.b16 %v1225
    %v1780 = vunpack.c.l.b16 %v1226
    %v1781 = vunpack.c.h.b16 %v1226
    %v1782 = vunpack.c.l.b16 %v1227
    %v1783 = vunpack.c.l.b16 %v1228
    %v1784 = vunpack.c.h.b16 %v1228
    %v1785 = vunpack.c.l.b16 %v1229
    %v1786 = vunpack.c.h.b16 %v1229
    %v1787 = vunpack.c.l.b16 %v1230
    %v1788 = vunpack.c.h.b16 %v1230
    %v1789 = vunpack.c.l.b16 %v1231
    %v1790 = vunpack.c.l.b16 %v1232
    %v1791 = vunpack.c.h.b16 %v1232
    %v1792 = vunpack.c.l.b16 %v1233
    %v1793 = vunpack.c.h.b16 %v1233
    %v1794 = vunpack.c.l.b16 %v1234
    %v1795 = vunpack.c.h.b16 %v1234
    %v1796 = vunpack.c.l.b16 %v1235
    %v1797 = vunpack.c.l.b16 %v1236
    %v1798 = vunpack.c.h.b16 %v1236
    %v1799 = vunpack.c.l.b16 %v1237
    %v1800 = vunpack.c.h.b16 %v1237
    %v1801 = vunpack.c.l.b16 %v1238
    %v1802 = vunpack.c.h.b16 %v1238
    %v1803 = vunpack.c.l.b16 %v1239
    %v1804 = vunpack.c.l.b16 %v1240
    %v1805 = vunpack.c.h.b16 %v1240
    %v1806 = vunpack.c.l.b16 %v1241
    %v1807 = vunpack.c.h.b16 %v1241
    %v1808 = vunpack.c.l.b16 %v1242
    %v1809 = vunpack.c.h.b16 %v1242
    %v1810 = vunpack.c.l.b16 %v1243
    %v1811 = vunpack.c.l.b16 %v1244
    %v1812 = vunpack.c.h.b16 %v1244
    %v1813 = vunpack.c.l.b16 %v1245
    %v1814 = vunpack.c.h.b16 %v1245
    %v1815 = vunpack.c.l.b16 %v1246
    %v1816 = vunpack.c.h.b16 %v1246
    %v1817 = vunpack.c.l.b16 %v1247
    %v1818 = vunpack.c.l.b16 %v1248
    %v1819 = vunpack.c.h.b16 %v1248
    %v1820 = vunpack.c.l.b16 %v1249
    %v1821 = vunpack.c.h.b16 %v1249
    %v1822 = vunpack.c.l.b16 %v1250
    %v1823 = vunpack.c.h.b16 %v1250
    %v1824 = vunpack.c.l.b16 %v1251
    %v1825 = vunpack.c.l.b16 %v1252
    %v1826 = vunpack.c.h.b16 %v1252
    %v1827 = vunpack.c.l.b16 %v1253
    %v1828 = vunpack.c.h.b16 %v1253
    %v1829 = vunpack.c.l.b16 %v1254
    %v1830 = vunpack.c.h.b16 %v1254
    %v1831 = vunpack.c.l.b16 %v1255
    %v1832 = vunpack.c.l.b16 %v1256
    %v1833 = vunpack.c.h.b16 %v1256
    %v1834 = vunpack.c.l.b16 %v1257
    %v1835 = vunpack.c.h.b16 %v1257
    %v1836 = vunpack.c.l.b16 %v1258
    %v1837 = vunpack.c.h.b16 %v1258
    %v1838 = vunpack.c.l.b16 %v1259
    %v1839 = vunpack.c.l.b16 %v1260
    %v1840 = vunpack.c.h.b16 %v1260
    %v1841 = vunpack.c.l.b16 %v1261
    %v1842 = vunpack.c.h.b16 %v1261
    %v1843 = vunpack.c.l.b16 %v1262
    %v1844 = vunpack.c.h.b16 %v1262
    %v1845 = vunpack.c.l.b16 %v1263
    %v1846 = vunpack.c.l.b16 %v1264
    %v1847 = vunpack.c.h.b16 %v1264
    %v1848 = vunpack.c.l.b16 %v1265
    %v1849 = vunpack.c.h.b16 %v1265
    %v1850 = vunpack.c.l.b16 %v1266
    %v1851 = vunpack.c.h.b16 %v1266
    %v1852 = vunpack.c.l.b16 %v1267
    %v1853 = vunpack.c.l.b16 %v1268
    %v1854 = vunpack.c.h.b16 %v1268
    %v1855 = vunpack.c.l.b16 %v1269
    %v1856 = vunpack.c.h.b16 %v1269
    %v1857 = vunpack.c.l.b16 %v1270
    %v1858 = vunpack.c.h.b16 %v1270
    %v1859 = vunpack.c.l.b16 %v1271
    %v1860 = vunpack.c.l.b16 %v1272
    %v1861 = vunpack.c.h.b16 %v1272
    %v1862 = vunpack.c.l.b16 %v1273
    %v1863 = vunpack.c.h.b16 %v1273
    %v1864 = vunpack.c.l.b16 %v1274
    %v1865 = vunpack.c.h.b16 %v1274
    %v1866 = vunpack.c.l.b16 %v1275
    %v1867 = vunpack.c.l.b16 %v1276
    %v1868 = vunpack.c.h.b16 %v1276
    %v1869 = vunpack.c.l.b16 %v1277
    %v1870 = vunpack.c.h.b16 %v1277
    %v1871 = vunpack.c.l.b16 %v1278
    %v1872 = vunpack.c.h.b16 %v1278
    %v1873 = vunpack.c.l.b16 %v1279
    %v1874 = vunpack.c.l.b16 %v1280
    %v1875 = vunpack.c.h.b16 %v1280
    %v1876 = vunpack.c.l.b16 %v1281
    %v1877 = vunpack.c.h.b16 %v1281
    %v1878 = vunpack.c.l.b16 %v1282
    %v1879 = vunpack.c.h.b16 %v1282
    %v1880 = vunpack.c.l.b16 %v1283
    %v1881 = vunpack.c.l.b16 %v1284
    %v1882 = vunpack.c.h.b16 %v1284
    %v1883 = vunpack.c.l.b16 %v1285
    %v1884 = vunpack.c.h.b16 %v1285
    %v1885 = vunpack.c.l.b16 %v1286
    %v1886 = vunpack.c.h.b16 %v1286
    %v1887 = vunpack.c.l.b16 %v1287
    %v1888 = vunpack.c.l.b16 %v1288
    %v1889 = vunpack.c.h.b16 %v1288
    %v1890 = vunpack.c.l.b16 %v1289
    %v1891 = vunpack.c.h.b16 %v1289
    %v1892 = vunpack.c.l.b16 %v1290
    %v1893 = vunpack.c.h.b16 %v1290
    %v1894 = vunpack.c.l.b16 %v1291
    %v1895 = vunpack.c.l.b16 %v1292
    %v1896 = vunpack.c.h.b16 %v1292
    %v1897 = vunpack.c.l.b16 %v1293
    %v1898 = vunpack.c.h.b16 %v1293
    %v1899 = vunpack.c.l.b16 %v1294
    %v1900 = vunpack.c.h.b16 %v1294
    %v1901 = vunpack.c.l.b16 %v1295
    %v1902 = vunpack.c.l.b16 %v1296
    %v1903 = vunpack.c.h.b16 %v1296
    %v1904 = vunpack.c.l.b16 %v1297
    %v1905 = vunpack.c.h.b16 %v1297
    %v1906 = vunpack.c.l.b16 %v1298
    %v1907 = vunpack.c.h.b16 %v1298
    %v1908 = vunpack.c.l.b16 %v1299
    %v1909 = vunpack.c.l.b16 %v1300
    %v1910 = vunpack.c.h.b16 %v1300
    %v1911 = vunpack.c.l.b16 %v1301
    %v1912 = vunpack.c.h.b16 %v1301
    %v1913 = vunpack.c.l.b16 %v1302
    %v1914 = vunpack.c.h.b16 %v1302
    %v1915 = vunpack.c.l.b16 %v1303
    %v1916 = vunpack.c.l.b16 %v1304
    %v1917 = vunpack.c.h.b16 %v1304
    %v1918 = vunpack.c.l.b16 %v1305
    %v1919 = vunpack.c.h.b16 %v1305
    %v1920 = vunpack.c.l.b16 %v1306
    %v1921 = vunpack.c.h.b16 %v1306
    %v1922 = vunpack.c.l.b16 %v1307
    %v1923 = vunpack.c.l.b16 %v1308
    %v1924 = vunpack.c.h.b16 %v1308
    %v1925 = vunpack.c.l.b16 %v1309
    %v1926 = vunpack.c.h.b16 %v1309
    %v1927 = vunpack.c.l.b16 %v1310
    %v1928 = vunpack.c.h.b16 %v1310
    %v1929 = vunpack.c.l.b16 %v1311
    %v1930 = vunpack.c.l.b16 %v1312
    %v1931 = vunpack.c.h.b16 %v1312
    %v1932 = vunpack.c.l.b16 %v1313
    %v1933 = vunpack.c.h.b16 %v1313
    %v1934 = vunpack.c.l.b16 %v1314
    %v1935 = vunpack.c.h.b16 %v1314
    %v1936 = vunpack.c.l.b16 %v1315
    %v1937 = vunpack.c.l.b16 %v1316
    %v1938 = vunpack.c.h.b16 %v1316
    %v1939 = vunpack.c.l.b16 %v1317
    %v1940 = vunpack.c.h.b16 %v1317
    %v1941 = vunpack.c.l.b16 %v1318
    %v1942 = vunpack.c.h.b16 %v1318
    %v1943 = vunpack.c.l.b16 %v1319
    %v1944 = vunpack.c.l.b16 %v1320
    %v1945 = vunpack.c.h.b16 %v1320
    %v1946 = vunpack.c.l.b16 %v1321
    %v1947 = vunpack.c.h.b16 %v1321
    %v1948 = vunpack.c.l.b16 %v1322
    %v1949 = vunpack.c.h.b16 %v1322
    %v1950 = vunpack.c.l.b16 %v1323
    %v1951 = vunpack.c.l.b16 %v1324
    %v1952 = vunpack.c.h.b16 %v1324
    %v1953 = vunpack.c.l.b16 %v1325
    %v1954 = vunpack.c.h.b16 %v1325
    %v1955 = vunpack.c.l.b16 %v1326
    %v1956 = vunpack.c.h.b16 %v1326
    %v1957 = vunpack.c.l.b16 %v1327
    %v1958 = vunpack.c.l.b16 %v1328
    %v1959 = vunpack.c.h.b16 %v1328
    %v1960 = vunpack.c.l.b16 %v1329
    %v1961 = vunpack.c.h.b16 %v1329
    %v1962 = vunpack.c.l.b16 %v1330
    %v1963 = vunpack.c.h.b16 %v1330
    %v1964 = vunpack.c.l.b16 %v1331
    %v1965 = vunpack.c.l.b16 %v1332
    %v1966 = vunpack.c.h.b16 %v1332
    %v1967 = vunpack.c.l.b16 %v1333
    %v1968 = vunpack.c.h.b16 %v1333
    %v1969 = vunpack.c.l.b16 %v1334
    %v1970 = vunpack.c.h.b16 %v1334
    %v1971 = vunpack.c.l.b16 %v1335
    %v1972 = vunpack.c.l.b16 %v1336
    %v1973 = vunpack.c.h.b16 %v1336
    %v1974 = vunpack.c.l.b16 %v1337
    %v1975 = vunpack.c.h.b16 %v1337
    %v1976 = vunpack.c.l.b16 %v1338
    %v1977 = vunpack.c.h.b16 %v1338
    %v1978 = vunpack.c.l.b16 %v1339
    %v1979 = vunpack.c.l.b16 %v1340
    %v1980 = vunpack.c.h.b16 %v1340
    %v1981 = vunpack.c.l.b16 %v1341
    %v1982 = vunpack.c.h.b16 %v1341
    %v1983 = vunpack.c.l.b16 %v1342
    %v1984 = vunpack.c.h.b16 %v1342
    %v1985 = vunpack.c.l.b16 %v1343
    %v1986 = vunpack.c.l.b16 %v1344
    %v1987 = vunpack.c.h.b16 %v1344
    %v1988 = vunpack.c.l.b16 %v1345
    %v1989 = vunpack.c.h.b16 %v1345
    %v1990 = vunpack.c.l.b16 %v1346
    %v1991 = vunpack.c.h.b16 %v1346
    %v1992 = vunpack.c.l.b16 %v1347
    %v1993 = vunpack.c.l.b16 %v1348
    %v1994 = vunpack.c.h.b16 %v1348
    %v1995 = vunpack.c.l.b16 %v1349
    %v1996 = vunpack.c.h.b16 %v1349
    %v1997 = vunpack.c.l.b16 %v1350
    %v1998 = vunpack.c.h.b16 %v1350
    %v1999 = vunpack.c.l.b16 %v1351
    %v2000 = vunpack.c.l.b16 %v1352
    %v2001 = vunpack.c.h.b16 %v1352
    %v2002 = vunpack.c.l.b16 %v1353
    %v2003 = vunpack.c.h.b16 %v1353
    %v2004 = vunpack.c.l.b16 %v1354
    %v2005 = vunpack.c.h.b16 %v1354
    %v2006 = vunpack.c.l.b16 %v1355
    %v2007 = vunpack.c.l.b16 %v1356
    %v2008 = vunpack.c.h.b16 %v1356
    %v2009 = vunpack.c.l.b16 %v1357
    %v2010 = vunpack.c.h.b16 %v1357
    %v2011 = vunpack.c.l.b16 %v1358
    %v2012 = vunpack.c.h.b16 %v1358
    %v2013 = vunpack.c.l.b16 %v1359
    %v2014 = vunpack.c.l.b16 %v1360
    %v2015 = vunpack.c.h.b16 %v1360
    %v2016 = vunpack.c.l.b16 %v1361
    %v2017 = vunpack.c.h.b16 %v1361
    %v2018 = vunpack.c.l.b16 %v1362
    %v2019 = vunpack.c.h.b16 %v1362
    %v2020 = vunpack.c.l.b16 %v1363
    %v2021 = vunpack.c.l.b16 %v1364
    %v2022 = vunpack.c.h.b16 %v1364
    %v2023 = vunpack.c.l.b16 %v1365
    %v2024 = vunpack.c.h.b16 %v1365
    %v2025 = vunpack.c.l.b16 %v1366
    %v2026 = vunpack.c.h.b16 %v1366
    %v2027 = vunpack.c.l.b16 %v1367
    %v2028 = vunpack.c.l.b16 %v1368
    %v2029 = vunpack.c.h.b16 %v1368
    %v2030 = vunpack.c.l.b16 %v1369
    %v2031 = vunpack.c.h.b16 %v1369
    %v2032 = vunpack.c.l.b16 %v1370
    %v2033 = vunpack.c.h.b16 %v1370
    %v2034 = vunpack.c.l.b16 %v1371
    %v2035 = vunpack.c.l.b16 %v1372
    %v2036 = vunpack.c.h.b16 %v1372
    %v2037 = vunpack.c.l.b16 %v1373
    %v2038 = vunpack.c.h.b16 %v1373
    %v2039 = vunpack.c.l.b16 %v1374
    %v2040 = vunpack.c.h.b16 %v1374
    %v2041 = vunpack.c.l.b16 %v1375
    %v2042 = vunpack.c.l.b16 %v1376
    %v2043 = vunpack.c.h.b16 %v1376
    %v2044 = vunpack.c.l.b16 %v1377
    %v2045 = vunpack.c.h.b16 %v1377
    %v2046 = vunpack.c.l.b16 %v1378
    %v2047 = vunpack.c.h.b16 %v1378
    %v2048 = vunpack.c.l.b16 %v1379
    %v2049 = vunpack.c.l.b16 %v1380
    %v2050 = vunpack.c.h.b16 %v1380
    %v2051 = vunpack.c.l.b16 %v1381
    %v2052 = vunpack.c.h.b16 %v1381
    %v2053 = vunpack.c.l.b16 %v1382
    %v2054 = vunpack.c.h.b16 %v1382
    %v2055 = vunpack.c.l.b16 %v1383
    %v2056 = vunpack.c.l.b16 %v1384
    %v2057 = vunpack.c.h.b16 %v1384
    %v2058 = vunpack.c.l.b16 %v1385
    %v2059 = vunpack.c.h.b16 %v1385
    %v2060 = vunpack.c.l.b16 %v1386
    %v2061 = vunpack.c.h.b16 %v1386
    %v2062 = vunpack.c.l.b16 %v1387
    %v2063 = vunpack.c.l.b16 %v1388
    %v2064 = vunpack.c.h.b16 %v1388
    %v2065 = vunpack.c.l.b16 %v1389
    %v2066 = vunpack.c.h.b16 %v1389
    %v2067 = vunpack.c.l.b16 %v1390
    %v2068 = vunpack.c.h.b16 %v1390
    %v2069 = vunpack.c.l.b16 %v1391
    %v2070 = vunpack.c.l.b16 %v1392
    %v2071 = vunpack.c.h.b16 %v1392
    %v2072 = vunpack.c.l.b16 %v1393
    %v2073 = vunpack.c.h.b16 %v1393
    %v2074 = vunpack.c.l.b16 %v1394
    %v2075 = vunpack.c.h.b16 %v1394
    %v2076 = vunpack.c.l.b16 %v1395
    %v2077 = vunpack.c.l.b16 %v1396
    %v2078 = vunpack.c.h.b16 %v1396
    %v2079 = vunpack.c.l.b16 %v1397
    %v2080 = vunpack.c.h.b16 %v1397
    %v2081 = vunpack.c.l.b16 %v1398
    %v2082 = vunpack.c.h.b16 %v1398
    %v2083 = vunpack.c.l.b16 %v1399
    %v2084 = vunpack.c.l.b16 %v1400
    %v2085 = vunpack.c.h.b16 %v1400
    %v2086 = vunpack.c.l.b16 %v1401
    %v2087 = vunpack.c.h.b16 %v1401
    %v2088 = vunpack.c.l.b16 %v1402
    %v2089 = vunpack.c.h.b16 %v1402
    %v2090 = vunpack.c.l.b16 %v1403
    %v2091 = vunpack.c.l.b16 %v1404
    %v2092 = vunpack.c.h.b16 %v1404
    %v2093 = vunpack.c.l.b16 %v1405
    %v2094 = vunpack.c.h.b16 %v1405
    %v2095 = vunpack.c.l.b16 %v1406
    %v2096 = vunpack.c.h.b16 %v1406
    %v2097 = vunpack.c.l.b16 %v1407
    %v2098 = vunpack.c.l.b16 %v1408
    %v2099 = vunpack.c.h.b16 %v1408
    %v2100 = vunpack.c.l.b16 %v1409
    %v2101 = vunpack.c.h.b16 %v1409
    %v2102 = vunpack.c.l.b16 %v1410
    %v2103 = vunpack.c.h.b16 %v1410
    %v2104 = vunpack.c.l.b16 %v1411
    %v2105 = vunpack.c.l.b16 %v1412
    %v2106 = vunpack.c.h.b16 %v1412
    %v2107 = vunpack.c.l.b16 %v1413
    %v2108 = vunpack.c.h.b16 %v1413
    %v2109 = vunpack.c.l.b16 %v1414
    %v2110 = vunpack.c.h.b16 %v1414
    %v2111 = vunpack.c.l.b16 %v1415
    %v2112 = vunpack.c.l.b16 %v1416
    %v2113 = vunpack.c.h.b16 %v1416
    %v2114 = vunpack.c.l.b16 %v1417
    %v2115 = vunpack.c.h.b16 %v1417
    %v2116 = vunpack.c.l.b16 %v1418
    %v2117 = vunpack.c.h.b16 %v1418
    %v2118 = vunpack.c.l.b16 %v1419
    %v2119 = vunpack.c.l.b16 %v1420
    %v2120 = vunpack.c.h.b16 %v1420
    %v2121 = vunpack.c.l.b16 %v1421
    %v2122 = vunpack.c.h.b16 %v1421
    %v2123 = vunpack.c.l.b16 %v1422
    %v2124 = vunpack.c.h.b16 %v1422
    %v2125 = vunpack.c.l.b16 %v1423
    %v2126 = vunpack.c.l.b16 %v1424
    %v2127 = vunpack.c.h.b16 %v1424
    %v2128 = vunpack.c.l.b16 %v1425
    %v2129 = vunpack.c.h.b16 %v1425
    %v2130 = vunpack.c.l.b16 %v1426
    %v2131 = vunpack.c.h.b16 %v1426
    %v2132 = vunpack.c.l.b16 %v1427
    %v2133 = vunpack.c.l.b16 %v1428
    %v2134 = vunpack.c.h.b16 %v1428
    %v2135 = vunpack.c.l.b16 %v1429
    %v2136 = vunpack.c.h.b16 %v1429
    %v2137 = vunpack.c.l.b16 %v1430
    %v2138 = vunpack.c.h.b16 %v1430
    %v2139 = vunpack.c.l.b16 %v1431
    %v2140 = vunpack.c.l.b16 %v1432
    %v2141 = vunpack.c.h.b16 %v1432
    %v2142 = vunpack.c.l.b16 %v1433
    %v2143 = vunpack.c.h.b16 %v1433
    %v2144 = vunpack.c.l.b16 %v1434
    %v2145 = vunpack.c.h.b16 %v1434
    %v2146 = vunpack.c.l.b16 %v1435
    %v2147 = vunpack.c.l.b16 %v1436
    %v2148 = vunpack.c.h.b16 %v1436
    %v2149 = vunpack.c.l.b16 %v1437
    %v2150 = vunpack.c.h.b16 %v1437
    %v2151 = vunpack.c.l.b16 %v1438
    %v2152 = vunpack.c.h.b16 %v1438
    %v2153 = vunpack.c.l.b16 %v1439
    %v2154 = vunpack.c.l.b16 %v1440
    %v2155 = vunpack.c.h.b16 %v1440
    %v2156 = vunpack.c.l.b16 %v1441
    %v2157 = vunpack.c.h.b16 %v1441
    %v2158 = vunpack.c.l.b16 %v1442
    %v2159 = vunpack.c.h.b16 %v1442
    %v2160 = vunpack.c.l.b16 %v1443
    %v2161 = vunpack.c.l.b16 %v1444
    %v2162 = vunpack.c.h.b16 %v1444
    %v2163 = vunpack.c.l.b16 %v1445
    %v2164 = vunpack.c.h.b16 %v1445
    %v2165 = vunpack.c.l.b16 %v1446
    %v2166 = vunpack.c.h.b16 %v1446
    %v2167 = vunpack.c.l.b16 %v1447
    %v2168 = vunpack.c.l.b16 %v1448
    %v2169 = vunpack.c.h.b16 %v1448
    %v2170 = vunpack.c.l.b16 %v1449
    %v2171 = vunpack.c.h.b16 %v1449
    %v2172 = vunpack.c.l.b16 %v1450
    %v2173 = vunpack.c.h.b16 %v1450
    %v2174 = vunpack.c.l.b16 %v1451
    %v2175 = vunpack.c.l.b16 %v1452
    %v2176 = vunpack.c.h.b16 %v1452
    %v2177 = vunpack.c.l.b16 %v1453
    %v2178 = vunpack.c.h.b16 %v1453
    %v2179 = vunpack.c.l.b16 %v1454
    %v2180 = vunpack.c.h.b16 %v1454
    %v2181 = vunpack.c.l.b16 %v1455
    %v2182 = vunpack.c.l.b16 %v1456
    %v2183 = vunpack.c.h.b16 %v1456
    %v2184 = vunpack.c.l.b16 %v1457
    %v2185 = vunpack.c.h.b16 %v1457
    %v2186 = vunpack.c.l.b16 %v1458
    %v2187 = vunpack.c.h.b16 %v1458
    %v2188 = vunpack.c.l.b16 %v1459
    %v2189 = vunpack.c.l.b16 %v1460
    %v2190 = vunpack.c.h.b16 %v1460
    %v2191 = vunpack.c.l.b16 %v1461
    %v2192 = vunpack.c.h.b16 %v1461
    %v2193 = vunpack.c.l.b16 %v1462
    %v2194 = vunpack.c.h.b16 %v1462
    %v2195 = vunpack.c.l.b16 %v1463
    %v2196 = vunpack.c.l.b16 %v1464
    %v2197 = vunpack.c.h.b16 %v1464
    %v2198 = vunpack.c.l.b16 %v1465
    %v2199 = vunpack.c.h.b16 %v1465
    %v2200 = vunpack.c.l.b16 %v1466
    %v2201 = vunpack.c.h.b16 %v1466
    %v2202 = vunpack.c.l.b16 %v1467
    %v2203 = vunpack.c.l.b16 %v1468
    %v2204 = vunpack.c.h.b16 %v1468
    %v2205 = vunpack.c.l.b16 %v1469
    %v2206 = vunpack.c.h.b16 %v1469
    %v2207 = vunpack.c.l.b16 %v1470
    %v2208 = vunpack.c.h.b16 %v1470
    %v2209 = vunpack.c.l.b16 %v1471
    %v2210 = vunpack.c.l.b16 %v1472
    %v2211 = vunpack.c.h.b16 %v1472
    %v2212 = vunpack.c.l.b16 %v1473
    %v2213 = vunpack.c.h.b16 %v1473
    %v2214 = vunpack.c.l.b16 %v1474
    %v2215 = vunpack.c.h.b16 %v1474
    %v2216 = vunpack.c.l.b16 %v1475
    %v2217 = vpack.c.b16 %v1776, %v1769
    %v2218 = vpack.c.b16 %v1777, %v1770
    %v2219 = vpack.c.b16 %v1778, %v1771
    %v2220 = vpack.c.b16 %v1779, %v1772
    %v2221 = vpack.c.b16 %v1780, %v1773
    %v2222 = vpack.c.b16 %v1781, %v1774
    %v2223 = vpack.c.b16 %v1782, %v1775
    %v2224 = vpack.c.b16 %v1790, %v1783
    %v2225 = vpack.c.b16 %v1791, %v1784
    %v2226 = vpack.c.b16 %v1792, %v1785
    %v2227 = vpack.c.b16 %v1793, %v1786
    %v2228 = vpack.c.b16 %v1794, %v1787
    %v2229 = vpack.c.b16 %v1795, %v1788
    %v2230 = vpack.c.b16 %v1796, %v1789
    %v2231 = vpack.c.b16 %v1804, %v1797
    %v2232 = vpack.c.b16 %v1805, %v1798
    %v2233 = vpack.c.b16 %v1806, %v1799
    %v2234 = vpack.c.b16 %v1807, %v1800
    %v2235 = vpack.c.b16 %v1808, %v1801
    %v2236 = vpack.c.b16 %v1809, %v1802
    %v2237 = vpack.c.b16 %v1810, %v1803
    %v2238 = vpack.c.b16 %v1818, %v1811
    %v2239 = vpack.c.b16 %v1819, %v1812
    %v2240 = vpack.c.b16 %v1820, %v1813
    %v2241 = vpack.c.b16 %v1821, %v1814
    %v2242 = vpack.c.b16 %v1822, %v1815
    %v2243 = vpack.c.b16 %v1823, %v1816
    %v2244 = vpack.c.b16 %v1824, %v1817
    %v2245 = vpack.c.b16 %v1832, %v1825
    %v2246 = vpack.c.b16 %v1833, %v1826
    %v2247 = vpack.c.b16 %v1834, %v1827
    %v2248 = vpack.c.b16 %v1835, %v1828
    %v2249 = vpack.c.b16 %v1836, %v1829
    %v2250 = vpack.c.b16 %v1837, %v1830
    %v2251 = vpack.c.b16 %v1838, %v1831
    %v2252 = vpack.c.b16 %v1846, %v1839
    %v2253 = vpack.c.b16 %v1847, %v1840
    %v2254 = vpack.c.b16 %v1848, %v1841
    %v2255 = vpack.c.b16 %v1849, %v1842
    %v2256 = vpack.c.b16 %v1850, %v1843
    %v2257 = vpack.c.b16 %v1851, %v1844
    %v2258 = vpack.c.b16 %v1852, %v1845
    %v2259 = vpack.c.b16 %v1860, %v1853
    %v2260 = vpack.c.b16 %v1861, %v1854
    %v2261 = vpack.c.b16 %v1862, %v1855
    %v2262 = vpack.c.b16 %v1863, %v1856
    %v2263 = vpack.c.b16 %v1864, %v1857
    %v2264 = vpack.c.b16 %v1865, %v1858
    %v2265 = vpack.c.b16 %v1866, %v1859
    %v2266 = vpack.c.b16 %v1874, %v1867
    %v2267 = vpack.c.b16 %v1875, %v1868
    %v2268 = vpack.c.b16 %v1876, %v1869
    %v2269 = vpack.c.b16 %v1877, %v1870
    %v2270 = vpack.c.b16 %v1878, %v1871
    %v2271 = vpack.c.b16 %v1879, %v1872
    %v2272 = vpack.c.b16 %v1880, %v1873
    %v2273 = vpack.c.b16 %v1888, %v1881
    %v2274 = vpack.c.b16 %v1889, %v1882
    %v2275 = vpack.c.b16 %v1890, %v1883
    %v2276 = vpack.c.b16 %v1891, %v1884
    %v2277 = vpack.c.b16 %v1892, %v1885
    %v2278 = vpack.c.b16 %v1893, %v1886
    %v2279 = vpack.c.b16 %v1894, %v1887
    %v2280 = vpack.c.b16 %v1902, %v1895
    %v2281 = vpack.c.b16 %v1903, %v1896
    %v2282 = vpack.c.b16 %v1904, %v1897
    %v2283 = vpack.c.b16 %v1905, %v1898
    %v2284 = vpack.c.b16 %v1906, %v1899
    %v2285 = vpack.c.b16 %v1907, %v1900
    %v2286 = vpack.c.b16 %v1908, %v1901
    %v2287 = vpack.c.b16 %v1916, %v1909
    %v2288 = vpack.c.b16 %v1917, %v1910
    %v2289 = vpack.c.b16 %v1918, %v1911
    %v2290 = vpack.c.b16 %v1919, %v1912
    %v2291 = vpack.c.b16 %v1920, %v1913
    %v2292 = vpack.c.b16 %v1921, %v1914
    %v2293 = vpack.c.b16 %v1922, %v1915
    %v2294 = vpack.c.b16 %v1930, %v1923
    %v2295 = vpack.c.b16 %v1931, %v1924
    %v2296 = vpack.c.b16 %v1932, %v1925
    %v2297 = vpack.c.b16 %v1933, %v1926
    %v2298 = vpack.c.b16 %v1934, %v1927
    %v2299 = vpack.c.b16 %v1935, %v1928
    %v2300 = vpack.c.b16 %v1936, %v1929
    %v2301 = vpack.c.b16 %v1944, %v1937
    %v2302 = vpack.c.b16 %v1945, %v1938
    %v2303 = vpack.c.b16 %v1946, %v1939
    %v2304 = vpack.c.b16 %v1947, %v1940
    %v2305 = vpack.c.b16 %v1948, %v1941
    %v2306 = vpack.c.b16 %v1949, %v1942
    %v2307 = vpack.c.b16 %v1950, %v1943
    %v2308 = vpack.c.b16 %v1958, %v1951
    %v2309 = vpack.c.b16 %v1959, %v1952
    %v2310 = vpack.c.b16 %v1960, %v1953
    %v2311 = vpack.c.b16 %v1961, %v1954
    %v2312 = vpack.c.b16 %v1962, %v1955
    %v2313 = vpack.c.b16 %v1963, %v1956
    %v2314 = vpack.c.b16 %v1964, %v1957
    %v2315 = vpack.c.b16 %v1972, %v1965
    %v2316 = vpack.c.b16 %v1973, %v1966
    %v2317 = vpack.c.b16 %v1974, %v1967
    %v2318 = vpack.c.b16 %v1975, %v1968
    %v2319 = vpack.c.b16 %v1976, %v1969
    %v2320 = vpack.c.b16 %v1977, %v1970
    %v2321 = vpack.c.b16 %v1978, %v1971
    %v2322 = vpack.c.b16 %v1986, %v1979
    %v2323 = vpack.c.b16 %v1987, %v1980
    %v2324 = vpack.c.b16 %v1988, %v1981
    %v2325 = vpack.c.b16 %v1989, %v1982
    %v2326 = vpack.c.b16 %v1990, %v1983
    %v2327 = vpack.c.b16 %v1991, %v1984
    %v2328 = vpack.c.b16 %v1992, %v1985
    %v2329 = vpack.c.b16 %v2000, %v1993
    %v2330 = vpack.c.b16 %v2001, %v1994
    %v2331 = vpack.c.b16 %v2002, %v1995
    %v2332 = vpack.c.b16 %v2003, %v1996
    %v2333 = vpack.c.b16 %v2004, %v1997
    %v2334 = vpack.c.b16 %v2005, %v1998
    %v2335 = vpack.c.b16 %v2006, %v1999
    %v2336 = vpack.c.b16 %v2014, %v2007
    %v2337 = vpack.c.b16 %v2015, %v2008
    %v2338 = vpack.c.b16 %v2016, %v2009
    %v2339 = vpack.c.b16 %v2017, %v2010
    %v2340 = vpack.c.b16 %v2018, %v2011
    %v2341 = vpack.c.b16 %v2019, %v2012
    %v2342 = vpack.c.b16 %v2020, %v2013
    %v2343 = vpack.c.b16 %v2028, %v2021
    %v2344 = vpack.c.b16 %v2029, %v2022
    %v2345 = vpack.c.b16 %v2030, %v2023
    %v2346 = vpack.c.b16 %v2031, %v2024
    %v2347 = vpack.c.b16 %v2032, %v2025
    %v2348 = vpack.c.b16 %v2033, %v2026
    %v2349 = vpack.c.b16 %v2034, %v2027
    %v2350 = vpack.c.b16 %v2042, %v2035
    %v2351 = vpack.c.b16 %v2043, %v2036
    %v2352 = vpack.c.b16 %v2044, %v2037
    %v2353 = vpack.c.b16 %v2045, %v2038
    %v2354 = vpack.c.b16 %v2046, %v2039
    %v2355 = vpack.c.b16 %v2047, %v2040
    %v2356 = vpack.c.b16 %v2048, %v2041
    %v2357 = vpack.c.b16 %v2056, %v2049
    %v2358 = vpack.c.b16 %v2057, %v2050
    %v2359 = vpack.c.b16 %v2058, %v2051
    %v2360 = vpack.c.b16 %v2059, %v2052
    %v2361 = vpack.c.b16 %v2060, %v2053
    %v2362 = vpack.c.b16 %v2061, %v2054
    %v2363 = vpack.c.b16 %v2062, %v2055
    %v2364 = vpack.c.b16 %v2070, %v2063
    %v2365 = vpack.c.b16 %v2071, %v2064
    %v2366 = vpack.c.b16 %v2072, %v2065
    %v2367 = vpack.c.b16 %v2073, %v2066
    %v2368 = vpack.c.b16 %v2074, %v2067
    %v2369 = vpack.c.b16 %v2075, %v2068
    %v2370 = vpack.c.b16 %v2076, %v2069
    %v2371 = vpack.c.b16 %v2084, %v2077
    %v2372 = vpack.c.b16 %v2085, %v2078
    %v2373 = vpack.c.b16 %v2086, %v2079
    %v2374 = vpack.c.b16 %v2087, %v2080
    %v2375 = vpack.c.b16 %v2088, %v2081
    %v2376 = vpack.c.b16 %v2089, %v2082
    %v2377 = vpack.c.b16 %v2090, %v2083
    %v2378 = vpack.c.b16 %v2098, %v2091
    %v2379 = vpack.c.b16 %v2099, %v2092
    %v2380 = vpack.c.b16 %v2100, %v2093
    %v2381 = vpack.c.b16 %v2101, %v2094
    %v2382 = vpack.c.b16 %v2102, %v2095
    %v2383 = vpack.c.b16 %v2103, %v2096
    %v2384 = vpack.c.b16 %v2104, %v2097
    %v2385 = vpack.c.b16 %v2112, %v2105
    %v2386 = vpack.c.b16 %v2113, %v2106
    %v2387 = vpack.c.b16 %v2114, %v2107
    %v2388 = vpack.c.b16 %v2115, %v2108
    %v2389 = vpack.c.b16 %v2116, %v2109
    %v2390 = vpack.c.b16 %v2117, %v2110
    %v2391 = vpack.c.b16 %v2118, %v2111
    %v2392 = vpack.c.b16 %v2126, %v2119
    %v2393 = vpack.c.b16 %v2127, %v2120
    %v2394 = vpack.c.b16 %v2128, %v2121
    %v2395 = vpack.c.b16 %v2129, %v2122
    %v2396 = vpack.c.b16 %v2130, %v2123
    %v2397 = vpack.c.b16 %v2131, %v2124
    %v2398 = vpack.c.b16 %v2132, %v2125
    %v2399 = vpack.c.b16 %v2140, %v2133
    %v2400 = vpack.c.b16 %v2141, %v2134
    %v2401 = vpack.c.b16 %v2142, %v2135
    %v2402 = vpack.c.b16 %v2143, %v2136
    %v2403 = vpack.c.b16 %v2144, %v2137
    %v2404 = vpack.c.b16 %v2145, %v2138
    %v2405 = vpack.c.b16 %v2146, %v2139
    %v2406 = vpack.c.b16 %v2154, %v2147
    %v2407 = vpack.c.b16 %v2155, %v2148
    %v2408 = vpack.c.b16 %v2156, %v2149
    %v2409 = vpack.c.b16 %v2157, %v2150
    %v2410 = vpack.c.b16 %v2158, %v2151
    %v2411 = vpack.c.b16 %v2159, %v2152
    %v2412 = vpack.c.b16 %v2160, %v2153
    %v2413 = vpack.c.b16 %v2168, %v2161
    %v2414 = vpack.c.b16 %v2169, %v2162
    %v2415 = vpack.c.b16 %v2170, %v2163
    %v2416 = vpack.c.b16 %v2171, %v2164
    %v2417 = vpack.c.b16 %v2172, %v2165
    %v2418 = vpack.c.b16 %v2173, %v2166
    %v2419 = vpack.c.b16 %v2174, %v2167
    %v2420 = vpack.c.b16 %v2182, %v2175
    %v2421 = vpack.c.b16 %v2183, %v2176
    %v2422 = vpack.c.b16 %v2184, %v2177
    %v2423 = vpack.c.b16 %v2185, %v2178
    %v2424 = vpack.c.b16 %v2186, %v2179
    %v2425 = vpack.c.b16 %v2187, %v2180
    %v2426 = vpack.c.b16 %v2188, %v2181
    %v2427 = vpack.c.b16 %v2196, %v2189
    %v2428 = vpack.c.b16 %v2197, %v2190
    %v2429 = vpack.c.b16 %v2198, %v2191
    %v2430 = vpack.c.b16 %v2199, %v2192
    %v2431 = vpack.c.b16 %v2200, %v2193
    %v2432 = vpack.c.b16 %v2201, %v2194
    %v2433 = vpack.c.b16 %v2202, %v2195
    %v2434 = vpack.c.b16 %v2210, %v2203
    %v2435 = vpack.c.b16 %v2211, %v2204
    %v2436 = vpack.c.b16 %v2212, %v2205
    %v2437 = vpack.c.b16 %v2213, %v2206
    %v2438 = vpack.c.b16 %v2214, %v2207
    %v2439 = vpack.c.b16 %v2215, %v2208
    %v2440 = vpack.c.b16 %v2216, %v2209
    %2665 = vmatprep.subr.bf16.mxu0 %v2267
    %2666 = vmatpush1.bf16.msra.mxu0 %v2266
    %2667 = vmatprep.subr.bf16.mxu0 %v2260
    %2668 = vmatpush1.bf16.msra.mxu0 %v2259
    %2669 = vmatprep.subr.bf16.mxu0 %v2253
    %2670 = vmatpush1.bf16.msra.mxu0 %v2252
    %2671 = vmatprep.subr.bf16.mxu0 %v2246
    %2672 = vmatpush1.bf16.msra.mxu0 %v2245
    %2673 = vmatprep.subr.bf16.mxu0 %v2239
    %2674 = vmatpush1.bf16.msra.mxu0 %v2238
    %2675 = vmatprep.subr.bf16.mxu0 %v2232
    %2676 = vmatpush1.bf16.msra.mxu0 %v2231
    %2677 = vmatprep.subr.bf16.mxu0 %v2225
    %2678 = vmatpush1.bf16.msra.mxu0 %v2224
    %2679 = vmatprep.subr.bf16.mxu0 %v2218
    %2680 = vmatpush1.bf16.msra.mxu0 %v2217
    %2681 = vmatprep.subr.bf16.mxu0 %v2323
    %2682 = vmatpush2.bf16.msra.mxu0 %v2322
    %2683 = vmatprep.subr.bf16.mxu0 %v2316
    %2684 = vmatpush2.bf16.msra.mxu0 %v2315
    %2685 = vmatprep.subr.bf16.mxu0 %v2309
    %2686 = vmatpush2.bf16.msra.mxu0 %v2308
    %2687 = vmatprep.subr.bf16.mxu0 %v2302
    %2688 = vmatpush2.bf16.msra.mxu0 %v2301
    %2689 = vmatprep.subr.bf16.mxu0 %v2295
    %2690 = vmatpush2.bf16.msra.mxu0 %v2294
    %2691 = vmatprep.subr.bf16.mxu0 %v2288
    %2692 = vmatpush2.bf16.msra.mxu0 %v2287
    %2693 = vmatprep.subr.bf16.mxu0 %v2281
    %2694 = vmatpush2.bf16.msra.mxu0 %v2280
    %2695 = vmatprep.subr.bf16.mxu0 %v2274
    %2696 = vmatpush2.bf16.msra.mxu0 %v2273
    %2697 = vmatprep.mubr.bf16.mxu0 %v1217
    %2698 = vmatmul.mubr.bf16.gmra.mxu0 %v1216
    %v2699 = vpop.f32.mrf.mxu0
    %v2700 = vadd.f32 %v1481, %v2699
    %v2701 = vpop.f32.mrf.mxu0
    %v2702 = vadd.f32 %v1485, %v2701
    %v2703 = vpop.f32.mrf.mxu0
    %v2704 = vpop.f32.mrf.mxu0
    %2705 = vdwg.mxu0
    %2706 = vmatprep.subr.bf16.mxu0 %v2379
    %2707 = vmatpush1.bf16.msra.mxu0 %v2378
    %2708 = vmatprep.subr.bf16.mxu0 %v2372
    %2709 = vmatpush1.bf16.msra.mxu0 %v2371
    %2710 = vmatprep.subr.bf16.mxu0 %v2365
    %2711 = vmatpush1.bf16.msra.mxu0 %v2364
    %2712 = vmatprep.subr.bf16.mxu0 %v2358
    %2713 = vmatpush1.bf16.msra.mxu0 %v2357
    %2714 = vmatprep.subr.bf16.mxu0 %v2351
    %2715 = vmatpush1.bf16.msra.mxu0 %v2350
    %2716 = vmatprep.subr.bf16.mxu0 %v2344
    %2717 = vmatpush1.bf16.msra.mxu0 %v2343
    %2718 = vmatprep.subr.bf16.mxu0 %v2337
    %2719 = vmatpush1.bf16.msra.mxu0 %v2336
    %2720 = vmatprep.subr.bf16.mxu0 %v2330
    %2721 = vmatpush1.bf16.msra.mxu0 %v2329
    %2722 = vmatprep.subr.bf16.mxu0 %v2435
    %2723 = vmatpush2.bf16.msra.mxu0 %v2434
    %2724 = vmatprep.subr.bf16.mxu0 %v2428
    %2725 = vmatpush2.bf16.msra.mxu0 %v2427
    %2726 = vmatprep.subr.bf16.mxu0 %v2421
    %2727 = vmatpush2.bf16.msra.mxu0 %v2420
    %2728 = vmatprep.subr.bf16.mxu0 %v2414
    %2729 = vmatpush2.bf16.msra.mxu0 %v2413
    %2730 = vmatprep.subr.bf16.mxu0 %v2407
    %2731 = vmatpush2.bf16.msra.mxu0 %v2406
    %2732 = vmatprep.subr.bf16.mxu0 %v2400
    %2733 = vmatpush2.bf16.msra.mxu0 %v2399
    %2734 = vmatprep.subr.bf16.mxu0 %v2393
    %2735 = vmatpush2.bf16.msra.mxu0 %v2392
    %2736 = vmatprep.subr.bf16.mxu0 %v2386
    %2737 = vmatpush2.bf16.msra.mxu0 %v2385
    %2738 = vmatprep.mubr.bf16.mxu0 %v1219
    %2739 = vmatmul.mubr.bf16.gmra.mxu0 %v1218
    %v2740 = vpop.f32.mrf.mxu0
    %v2741 = vadd.f32 %v2700, %v2740
    %v2742 = vpop.f32.mrf.mxu0
    %v2743 = vadd.f32 %v2702, %v2742
    %v2744 = vpop.f32.mrf.mxu0
    %v2745 = vpop.f32.mrf.mxu0
    %2746 = vdwg.mxu0
    %2747 = vmatprep.subr.bf16.mxu0 %v2269
    %2748 = vmatpush1.bf16.msra.mxu0 %v2268
    %2749 = vmatprep.subr.bf16.mxu0 %v2262
    %2750 = vmatpush1.bf16.msra.mxu0 %v2261
    %2751 = vmatprep.subr.bf16.mxu0 %v2255
    %2752 = vmatpush1.bf16.msra.mxu0 %v2254
    %2753 = vmatprep.subr.bf16.mxu0 %v2248
    %2754 = vmatpush1.bf16.msra.mxu0 %v2247
    %2755 = vmatprep.subr.bf16.mxu0 %v2241
    %2756 = vmatpush1.bf16.msra.mxu0 %v2240
    %2757 = vmatprep.subr.bf16.mxu0 %v2234
    %2758 = vmatpush1.bf16.msra.mxu0 %v2233
    %2759 = vmatprep.subr.bf16.mxu0 %v2227
    %2760 = vmatpush1.bf16.msra.mxu0 %v2226
    %2761 = vmatprep.subr.bf16.mxu0 %v2220
    %2762 = vmatpush1.bf16.msra.mxu0 %v2219
    %2763 = vmatprep.subr.bf16.mxu0 %v2325
    %2764 = vmatpush2.bf16.msra.mxu0 %v2324
    %2765 = vmatprep.subr.bf16.mxu0 %v2318
    %2766 = vmatpush2.bf16.msra.mxu0 %v2317
    %2767 = vmatprep.subr.bf16.mxu0 %v2311
    %2768 = vmatpush2.bf16.msra.mxu0 %v2310
    %2769 = vmatprep.subr.bf16.mxu0 %v2304
    %2770 = vmatpush2.bf16.msra.mxu0 %v2303
    %2771 = vmatprep.subr.bf16.mxu0 %v2297
    %2772 = vmatpush2.bf16.msra.mxu0 %v2296
    %2773 = vmatprep.subr.bf16.mxu0 %v2290
    %2774 = vmatpush2.bf16.msra.mxu0 %v2289
    %2775 = vmatprep.subr.bf16.mxu0 %v2283
    %2776 = vmatpush2.bf16.msra.mxu0 %v2282
    %2777 = vmatprep.subr.bf16.mxu0 %v2276
    %2778 = vmatpush2.bf16.msra.mxu0 %v2275
    %2779 = vmatprep.mubr.bf16.mxu0 %v1217
    %2780 = vmatmul.mubr.bf16.gmra.mxu0 %v1216
    %v2781 = vpop.f32.mrf.mxu0
    %v2782 = vadd.f32 %v1489, %v2781
    %v2783 = vpop.f32.mrf.mxu0
    %v2784 = vadd.f32 %v1493, %v2783
    %v2785 = vpop.f32.mrf.mxu0
    %v2786 = vpop.f32.mrf.mxu0
    %2787 = vdwg.mxu0
    %2788 = vmatprep.subr.bf16.mxu0 %v2381
    %2789 = vmatpush1.bf16.msra.mxu0 %v2380
    %2790 = vmatprep.subr.bf16.mxu0 %v2374
    %2791 = vmatpush1.bf16.msra.mxu0 %v2373
    %2792 = vmatprep.subr.bf16.mxu0 %v2367
    %2793 = vmatpush1.bf16.msra.mxu0 %v2366
    %2794 = vmatprep.subr.bf16.mxu0 %v2360
    %2795 = vmatpush1.bf16.msra.mxu0 %v2359
    %2796 = vmatprep.subr.bf16.mxu0 %v2353
    %2797 = vmatpush1.bf16.msra.mxu0 %v2352
    %2798 = vmatprep.subr.bf16.mxu0 %v2346
    %2799 = vmatpush1.bf16.msra.mxu0 %v2345
    %2800 = vmatprep.subr.bf16.mxu0 %v2339
    %2801 = vmatpush1.bf16.msra.mxu0 %v2338
    %2802 = vmatprep.subr.bf16.mxu0 %v2332
    %2803 = vmatpush1.bf16.msra.mxu0 %v2331
    %2804 = vmatprep.subr.bf16.mxu0 %v2437
    %2805 = vmatpush2.bf16.msra.mxu0 %v2436
    %2806 = vmatprep.subr.bf16.mxu0 %v2430
    %2807 = vmatpush2.bf16.msra.mxu0 %v2429
    %2808 = vmatprep.subr.bf16.mxu0 %v2423
    %2809 = vmatpush2.bf16.msra.mxu0 %v2422
    %2810 = vmatprep.subr.bf16.mxu0 %v2416
    %2811 = vmatpush2.bf16.msra.mxu0 %v2415
    %2812 = vmatprep.subr.bf16.mxu0 %v2409
    %2813 = vmatpush2.bf16.msra.mxu0 %v2408
    %2814 = vmatprep.subr.bf16.mxu0 %v2402
    %2815 = vmatpush2.bf16.msra.mxu0 %v2401
    %2816 = vmatprep.subr.bf16.mxu0 %v2395
    %2817 = vmatpush2.bf16.msra.mxu0 %v2394
    %2818 = vmatprep.subr.bf16.mxu0 %v2388
    %2819 = vmatpush2.bf16.msra.mxu0 %v2387
    %2820 = vmatprep.mubr.bf16.mxu0 %v1219
    %2821 = vmatmul.mubr.bf16.gmra.mxu0 %v1218
    %v2822 = vpop.f32.mrf.mxu0
    %v2823 = vadd.f32 %v2782, %v2822
    %v2824 = vpop.f32.mrf.mxu0
    %v2825 = vadd.f32 %v2784, %v2824
    %v2826 = vpop.f32.mrf.mxu0
    %v2827 = vpop.f32.mrf.mxu0
    %2828 = vdwg.mxu0
    %2829 = vmatprep.subr.bf16.mxu0 %v2271
    %2830 = vmatpush1.bf16.msra.mxu0 %v2270
    %2831 = vmatprep.subr.bf16.mxu0 %v2264
    %2832 = vmatpush1.bf16.msra.mxu0 %v2263
    %2833 = vmatprep.subr.bf16.mxu0 %v2257
    %2834 = vmatpush1.bf16.msra.mxu0 %v2256
    %2835 = vmatprep.subr.bf16.mxu0 %v2250
    %2836 = vmatpush1.bf16.msra.mxu0 %v2249
    %2837 = vmatprep.subr.bf16.mxu0 %v2243
    %2838 = vmatpush1.bf16.msra.mxu0 %v2242
    %2839 = vmatprep.subr.bf16.mxu0 %v2236
    %2840 = vmatpush1.bf16.msra.mxu0 %v2235
    %2841 = vmatprep.subr.bf16.mxu0 %v2229
    %2842 = vmatpush1.bf16.msra.mxu0 %v2228
    %2843 = vmatprep.subr.bf16.mxu0 %v2222
    %2844 = vmatpush1.bf16.msra.mxu0 %v2221
    %2845 = vmatprep.subr.bf16.mxu0 %v2327
    %2846 = vmatpush2.bf16.msra.mxu0 %v2326
    %2847 = vmatprep.subr.bf16.mxu0 %v2320
    %2848 = vmatpush2.bf16.msra.mxu0 %v2319
    %2849 = vmatprep.subr.bf16.mxu0 %v2313
    %2850 = vmatpush2.bf16.msra.mxu0 %v2312
    %2851 = vmatprep.subr.bf16.mxu0 %v2306
    %2852 = vmatpush2.bf16.msra.mxu0 %v2305
    %2853 = vmatprep.subr.bf16.mxu0 %v2299
    %2854 = vmatpush2.bf16.msra.mxu0 %v2298
    %2855 = vmatprep.subr.bf16.mxu0 %v2292
    %2856 = vmatpush2.bf16.msra.mxu0 %v2291
    %2857 = vmatprep.subr.bf16.mxu0 %v2285
    %2858 = vmatpush2.bf16.msra.mxu0 %v2284
    %2859 = vmatprep.subr.bf16.mxu0 %v2278
    %2860 = vmatpush2.bf16.msra.mxu0 %v2277
    %2861 = vmatprep.mubr.bf16.mxu0 %v1217
    %2862 = vmatmul.mubr.bf16.gmra.mxu0 %v1216
    %v2863 = vpop.f32.mrf.mxu0
    %v2864 = vadd.f32 %v1497, %v2863
    %v2865 = vpop.f32.mrf.mxu0
    %v2866 = vadd.f32 %v1501, %v2865
    %v2867 = vpop.f32.mrf.mxu0
    %v2868 = vpop.f32.mrf.mxu0
    %2869 = vdwg.mxu0
    %2870 = vmatprep.subr.bf16.mxu0 %v2383
    %2871 = vmatpush1.bf16.msra.mxu0 %v2382
    %2872 = vmatprep.subr.bf16.mxu0 %v2376
    %2873 = vmatpush1.bf16.msra.mxu0 %v2375
    %2874 = vmatprep.subr.bf16.mxu0 %v2369
    %2875 = vmatpush1.bf16.msra.mxu0 %v2368
    %2876 = vmatprep.subr.bf16.mxu0 %v2362
    %2877 = vmatpush1.bf16.msra.mxu0 %v2361
    %2878 = vmatprep.subr.bf16.mxu0 %v2355
    %2879 = vmatpush1.bf16.msra.mxu0 %v2354
    %2880 = vmatprep.subr.bf16.mxu0 %v2348
    %2881 = vmatpush1.bf16.msra.mxu0 %v2347
    %2882 = vmatprep.subr.bf16.mxu0 %v2341
    %2883 = vmatpush1.bf16.msra.mxu0 %v2340
    %2884 = vmatprep.subr.bf16.mxu0 %v2334
    %2885 = vmatpush1.bf16.msra.mxu0 %v2333
    %2886 = vmatprep.subr.bf16.mxu0 %v2439
    %2887 = vmatpush2.bf16.msra.mxu0 %v2438
    %2888 = vmatprep.subr.bf16.mxu0 %v2432
    %2889 = vmatpush2.bf16.msra.mxu0 %v2431
    %2890 = vmatprep.subr.bf16.mxu0 %v2425
    %2891 = vmatpush2.bf16.msra.mxu0 %v2424
    %2892 = vmatprep.subr.bf16.mxu0 %v2418
    %2893 = vmatpush2.bf16.msra.mxu0 %v2417
    %2894 = vmatprep.subr.bf16.mxu0 %v2411
    %2895 = vmatpush2.bf16.msra.mxu0 %v2410
    %2896 = vmatprep.subr.bf16.mxu0 %v2404
    %2897 = vmatpush2.bf16.msra.mxu0 %v2403
    %2898 = vmatprep.subr.bf16.mxu0 %v2397
    %2899 = vmatpush2.bf16.msra.mxu0 %v2396
    %2900 = vmatprep.subr.bf16.mxu0 %v2390
    %2901 = vmatpush2.bf16.msra.mxu0 %v2389
    %2902 = vmatprep.mubr.bf16.mxu0 %v1219
    %2903 = vmatmul.mubr.bf16.gmra.mxu0 %v1218
    %v2904 = vpop.f32.mrf.mxu0
    %v2905 = vadd.f32 %v2864, %v2904
    %v2906 = vpop.f32.mrf.mxu0
    %v2907 = vadd.f32 %v2866, %v2906
    %v2908 = vpop.f32.mrf.mxu0
    %v2909 = vpop.f32.mrf.mxu0
    %2910 = vdwg.mxu0
    %2911 = vmatprep.subr.bf16.mxu0 0
    %2912 = vmatpush1.bf16.msra.mxu0 %v2272
    %2913 = vmatprep.subr.bf16.mxu0 0
    %2914 = vmatpush1.bf16.msra.mxu0 %v2265
    %2915 = vmatprep.subr.bf16.mxu0 0
    %2916 = vmatpush1.bf16.msra.mxu0 %v2258
    %2917 = vmatprep.subr.bf16.mxu0 0
    %2918 = vmatpush1.bf16.msra.mxu0 %v2251
    %2919 = vmatprep.subr.bf16.mxu0 0
    %2920 = vmatpush1.bf16.msra.mxu0 %v2244
    %2921 = vmatprep.subr.bf16.mxu0 0
    %2922 = vmatpush1.bf16.msra.mxu0 %v2237
    %2923 = vmatprep.subr.bf16.mxu0 0
    %2924 = vmatpush1.bf16.msra.mxu0 %v2230
    %2925 = vmatprep.subr.bf16.mxu0 0
    %2926 = vmatpush1.bf16.msra.mxu0 %v2223
    %2927 = vmatprep.subr.bf16.mxu0 0
    %2928 = vmatpush2.bf16.msra.mxu0 %v2328
    %2929 = vmatprep.subr.bf16.mxu0 0
    %2930 = vmatpush2.bf16.msra.mxu0 %v2321
    %2931 = vmatprep.subr.bf16.mxu0 0
    %2932 = vmatpush2.bf16.msra.mxu0 %v2314
    %2933 = vmatprep.subr.bf16.mxu0 0
    %2934 = vmatpush2.bf16.msra.mxu0 %v2307
    %2935 = vmatprep.subr.bf16.mxu0 0
    %2936 = vmatpush2.bf16.msra.mxu0 %v2300
    %2937 = vmatprep.subr.bf16.mxu0 0
    %2938 = vmatpush2.bf16.msra.mxu0 %v2293
    %2939 = vmatprep.subr.bf16.mxu0 0
    %2940 = vmatpush2.bf16.msra.mxu0 %v2286
    %2941 = vmatprep.subr.bf16.mxu0 0
    %2942 = vmatpush2.bf16.msra.mxu0 %v2279
    %2943 = vmatprep.mubr.bf16.mxu0 %v1217
    %2944 = vmatmul.mubr.bf16.gmra.mxu0 %v1216
    %v2945 = vpop.f32.mrf.mxu0
    %v2946 = vadd.f32 %v1505, %v2945
    %v2947 = vpop.f32.mrf.mxu0
    %v2948 = vpop.f32.mrf.mxu0
    %v2949 = vpop.f32.mrf.mxu0
    %2950 = vdwg.mxu0
    %2951 = vmatprep.subr.bf16.mxu0 0
    %2952 = vmatpush1.bf16.msra.mxu0 %v2384
    %2953 = vmatprep.subr.bf16.mxu0 0
    %2954 = vmatpush1.bf16.msra.mxu0 %v2377
    %2955 = vmatprep.subr.bf16.mxu0 0
    %2956 = vmatpush1.bf16.msra.mxu0 %v2370
    %2957 = vmatprep.subr.bf16.mxu0 0
    %2958 = vmatpush1.bf16.msra.mxu0 %v2363
    %2959 = vmatprep.subr.bf16.mxu0 0
    %2960 = vmatpush1.bf16.msra.mxu0 %v2356
    %2961 = vmatprep.subr.bf16.mxu0 0
    %2962 = vmatpush1.bf16.msra.mxu0 %v2349
    %2963 = vmatprep.subr.bf16.mxu0 0
    %2964 = vmatpush1.bf16.msra.mxu0 %v2342
    %2965 = vmatprep.subr.bf16.mxu0 0
    %2966 = vmatpush1.bf16.msra.mxu0 %v2335
    %2967 = vmatprep.subr.bf16.mxu0 0
    %2968 = vmatpush2.bf16.msra.mxu0 %v2440
    %2969 = vmatprep.subr.bf16.mxu0 0
    %2970 = vmatpush2.bf16.msra.mxu0 %v2433
    %2971 = vmatprep.subr.bf16.mxu0 0
    %2972 = vmatpush2.bf16.msra.mxu0 %v2426
    %2973 = vmatprep.subr.bf16.mxu0 0
    %2974 = vmatpush2.bf16.msra.mxu0 %v2419
    %2975 = vmatprep.subr.bf16.mxu0 0
    %2976 = vmatpush2.bf16.msra.mxu0 %v2412
    %2977 = vmatprep.subr.bf16.mxu0 0
    %2978 = vmatpush2.bf16.msra.mxu0 %v2405
    %2979 = vmatprep.subr.bf16.mxu0 0
    %2980 = vmatpush2.bf16.msra.mxu0 %v2398
    %2981 = vmatprep.subr.bf16.mxu0 0
    %2982 = vmatpush2.bf16.msra.mxu0 %v2391
    %2983 = vmatprep.mubr.bf16.mxu0 %v1219
    %2984 = vmatmul.mubr.bf16.gmra.mxu0 %v1218
    %v2985 = vpop.f32.mrf.mxu0
    %v2986 = vadd.f32 %v2946, %v2985
    %v2987 = vpop.f32.mrf.mxu0
    %v2988 = vpop.f32.mrf.mxu0
    %v2989 = vpop.f32.mrf.mxu0
    %2990 = vdwg.mxu0
    %v2991 = vtanh.pop %v2741
    %v2992 = vtanh.pop %v2743
    %v2993 = vtanh.pop %v2823
    %v2994 = vtanh.pop %v2825
    %v2995 = vtanh.pop %v2905
    %v2996 = vtanh.pop %v2907
    %v2997 = vtanh.pop %v2986
    %2998 = vst [vmem:[#allocation17] sm:$0xff] %v2991
    %2999 = vst [vmem:[#allocation17 + $0x8] sm:$0xff] %v2992
    %3000 = vst [vmem:[#allocation17 + $0x10] sm:$0xff] %v2993
    %3001 = vst [vmem:[#allocation17 + $0x18] sm:$0xff] %v2994
    %3002 = vst [vmem:[#allocation17 + $0x20] sm:$0xff] %v2995
    %3003 = vst [vmem:[#allocation17 + $0x28] sm:$0xff] %v2996
    %3004 = vst [vmem:[#allocation17 + $0x30] sm:$0xff] %v2997
    // Predicated region
    $region90: #{tpu_custom_call.1} parent=1 // pred_check
      _
    $region91: #{tpu_custom_call.1} parent=1 // pred_check_branch
      %3006 = sbr.rel (0) target = $region93
    $region92: #{tpu_custom_call.1} parent=1 // pred_region
      %s3008 = ssub.s32 896, 896
      %3009 = vsyncadd [#allocation4], %s3008
      %s3011 = sshll.u32 [#allocation17], 4
      %s3012 = int_to_ptr.vmem [resolvable:$true] %s3011
      %3014 = dma.vmem_to_hbm [thread:$0]  %s3012, 896, %s13, [#allocation4]
    $region93: #{tpu_custom_call.1} parent=1 // pred_fallthru
      _
    // Predicated region
    $region94: #{tpu_custom_call.1} parent=1 // pred_check
      _
    $region95: #{tpu_custom_call.1} parent=1 // pred_check_branch
      %3016 = sbr.rel (0) target = $region97
    $region96: #{tpu_custom_call.1} parent=1 // pred_region
      %3017 = dma.done [#allocation4], 896
    $region97: #{tpu_custom_call.1} parent=1 // pred_fallthru
      _
    %3018 = vsyncpa [#allocation3], 1
    %3019 = vsyncpa [#allocation6], 1
    %3020 = vsyncpa [#allocation9], 1
    %3021 = vsyncpa [#allocation12], 1
    %3022 = vsyncpa [#allocation15], 1
    %3023 = vsyncpa [#allocation4], 1

</llo_original>
